<compile_context>
chip_gen: v7x
topology: tpu7x:2x2x1
jax: 0.10.0
libtpu: 0.0.40
codegen_flags: <defaults>
</compile_context>

<pallas_src>
import jax
import jax.numpy as jnp
from jax.experimental import pallas as pl
from jax.experimental.pallas import tpu as pltpu

EPS = 1e-5


# ----------------------------- kernels --------------------------------------

def _stage1_kernel(x_ref, s1_ref, h1_ref, w_ref, b_ref,
                   y_ref, stats_ref, pad_scr):
    """Per batch element (lane-dense (H, W*C) layout):
         t          = relu(BN1(x))                 (BN1 folded to scale/shift)
         [x2 | x1a] = [t(-1) | t(0) | t(+1) | x] @ w_fused + b_fused
       where x2 = conv3x3(t)+b1 + conv1x1_1(x)+b11 and
             x1a = conv3x3(t)+b1 + conv1x1_2(x)+b12 (the x-only part of out).
       Also emits per-image (sum, sum^2) of x2 for BN2 batch statistics."""
    H = x_ref.shape[1]
    WCi = x_ref.shape[2]
    WCo = stats_ref.shape[2]

    x = x_ref[0]                                          # (H, W*Cin)
    t = jnp.maximum(x * s1_ref[...] + h1_ref[...], 0.0)   # BN1 + ReLU

    # Row-halo scratch: rows 1..H hold t, rows 0 and H+1 are the zero halo.
    zrow = jnp.zeros((1, WCi), jnp.float32)
    pad_scr[0:1, :] = zrow
    pad_scr[H + 1:H + 2, :] = zrow
    pad_scr[1:H + 1, :] = t

    # Single fused MXU op: (H, 4*W*Cin) x (4*W*Cin, 2*W*Cout).
    buf = jnp.concatenate(
        [pad_scr[0:H, :], pad_scr[1:H + 1, :], pad_scr[2:H + 2, :], x], axis=1)
    res = jnp.dot(buf, w_ref[...], preferred_element_type=jnp.float32) + b_ref[...]

    y_ref[0] = res                                        # [x2 | x1a], 256-lane store

    # Per-image partial sums for BN2 batch stats (folded per-channel on host).
    x2 = res[:, :WCo]
    s = jnp.sum(x2, axis=0, keepdims=True)
    q = jnp.sum(x2 * x2, axis=0, keepdims=True)
    stats_ref[0] = jnp.concatenate([s, q], axis=0)


def _stage2_kernel(y_ref, s2_ref, h2_ref, w_ref, b_ref, out_ref, pad_scr):
    """Per batch element: out = x1a + conv3x3( relu( BN2(x2) ) ),
       with [x2 | x1a] read from the stage-1 lane-dense output and the 3x3 conv
       done as a single (H, 3*W*Cout) x (3*W*Cout, W*Cout) matmul."""
    H = y_ref.shape[1]
    WCo = out_ref.shape[2]

    y = y_ref[0]                                          # (H, 2*W*Cout)
    x2 = y[:, :WCo]
    x1a = y[:, WCo:]
    t = jnp.maximum(x2 * s2_ref[...] + h2_ref[...], 0.0)  # BN2 + ReLU

    zrow = jnp.zeros((1, WCo), jnp.float32)
    pad_scr[0:1, :] = zrow
    pad_scr[H + 1:H + 2, :] = zrow
    pad_scr[1:H + 1, :] = t

    buf = jnp.concatenate(
        [pad_scr[0:H, :], pad_scr[1:H + 1, :], pad_scr[2:H + 2, :]], axis=1)
    c2 = jnp.dot(buf, w_ref[...], preferred_element_type=jnp.float32) + b_ref[...]

    out_ref[0] = x1a + c2


# --------------------------- pallas_call wrappers ----------------------------

_VMEM_LIMIT = 32 * 1024 * 1024  # explicit scoped-VMEM limit (fits v5e/v6e/v7x)
# TODO(synk): if W / channels are ever scaled up, the O(W^2) banded weights plus
# default double-buffering will hit v7x's 64 MiB VMEM first; switch to per-dx
# matmuls with pltpu.roll lane shifts or tile W at that point.


def _stage1_call(x_ld, s1, h1, w_s1, b_s1):
    N, H, WCi = x_ld.shape
    WCo2 = w_s1.shape[1]          # 2 * W * Cout
    WCo = WCo2 // 2
    return pl.pallas_call(
        _stage1_kernel,
        out_shape=(
            jax.ShapeDtypeStruct((N, H, WCo2), jnp.float32),  # [x2 | x1a]
            jax.ShapeDtypeStruct((N, 2, WCo), jnp.float32),   # [sum(x2); sum(x2^2)]
        ),
        grid_spec=pltpu.PrefetchScalarGridSpec(
            num_scalar_prefetch=0,
            grid=(N,),
            in_specs=[
                pl.BlockSpec((1, H, WCi), lambda n: (n, 0, 0)),
                pl.BlockSpec((1, WCi), lambda n: (0, 0)),
                pl.BlockSpec((1, WCi), lambda n: (0, 0)),
                pl.BlockSpec(w_s1.shape, lambda n: (0, 0)),
                pl.BlockSpec((1, WCo2), lambda n: (0, 0)),
            ],
            out_specs=(
                pl.BlockSpec((1, H, WCo2), lambda n: (n, 0, 0)),
                pl.BlockSpec((1, 2, WCo), lambda n: (n, 0, 0)),
            ),
            scratch_shapes=[pltpu.VMEM((H + 2, WCi), jnp.float32)],
        ),
        compiler_params=pltpu.CompilerParams(
            dimension_semantics=("parallel",),
            vmem_limit_bytes=_VMEM_LIMIT),
    )(x_ld, s1, h1, w_s1, b_s1)


def _stage2_call(y, s2, h2, w_s2, b_s2):
    N, H, WCo2 = y.shape
    WCo = WCo2 // 2
    return pl.pallas_call(
        _stage2_kernel,
        out_shape=jax.ShapeDtypeStruct((N, H, WCo), jnp.float32),
        grid_spec=pltpu.PrefetchScalarGridSpec(
            num_scalar_prefetch=0,
            grid=(N,),
            in_specs=[
                pl.BlockSpec((1, H, WCo2), lambda n: (n, 0, 0)),
                pl.BlockSpec((1, WCo), lambda n: (0, 0)),
                pl.BlockSpec((1, WCo), lambda n: (0, 0)),
                pl.BlockSpec(w_s2.shape, lambda n: (0, 0)),
                pl.BlockSpec((1, WCo), lambda n: (0, 0)),
            ],
            out_specs=pl.BlockSpec((1, H, WCo), lambda n: (n, 0, 0)),
            scratch_shapes=[pltpu.VMEM((H + 2, WCo), jnp.float32)],
        ),
        compiler_params=pltpu.CompilerParams(
            dimension_semantics=("parallel",),
            vmem_limit_bytes=_VMEM_LIMIT),
    )(y, s2, h2, w_s2, b_s2)


# ------------------------- host-side weight folding --------------------------

def _banded_conv_weight(w_hwio, W):
    """Fold a 3x3 HWIO conv kernel into 3 block-banded matrices (one per dy):
         Wb[dy][(w+dx-1)*Cin + ci, w*Cout + co] = w_hwio[dy, dx, ci, co]
       so conv3x3 on the lane-dense image becomes matmuls over row shifts."""
    KH, KW, _, _ = w_hwio.shape
    per_dy = []
    for dy in range(KH):
        m = 0.0
        for dx in range(KW):
            shift = jnp.eye(W, k=1 - dx, dtype=jnp.float32)   # src_w = w + dx - 1
            m = m + jnp.kron(shift, w_hwio[dy, dx].astype(jnp.float32))
        per_dy.append(m)
    return jnp.stack(per_dy)                                   # (3, W*Cin, W*Cout)


def _tile_lane(v, W):
    """Per-channel vector (C,) -> lane-dense row (1, W*C) repeating over W."""
    return jnp.tile(v.astype(jnp.float32), W).reshape(1, -1)


def _fold_params(p, W):
    """One-time (per parameter set) fold of all conv weights into the fused
       lane-dense matmul operands used by the two kernels."""
    wb1 = _banded_conv_weight(p["w1"], W)                        # (3, WCi, WCo)
    wb2 = _banded_conv_weight(p["w2"], W)                        # (3, WCo, WCo)
    eye_w = jnp.eye(W, dtype=jnp.float32)
    k11 = jnp.kron(eye_w, p["w11"].astype(jnp.float32))          # (WCi, WCo)
    k12 = jnp.kron(eye_w, p["w12"].astype(jnp.float32))          # (WCi, WCo)

    # Stage-1 fused weight: rows = [dy0; dy1; dy2; 1x1], cols = [x2 | x1a].
    col_a = jnp.concatenate([wb1[0], wb1[1], wb1[2], k11], axis=0)
    col_b = jnp.concatenate([wb1[0], wb1[1], wb1[2], k12], axis=0)
    w_s1 = jnp.concatenate([col_a, col_b], axis=1)               # (4*WCi, 2*WCo)

    b1t = _tile_lane(p["b1"], W)
    b_s1 = jnp.concatenate([b1t + _tile_lane(p["b11"], W),
                            b1t + _tile_lane(p["b12"], W)], axis=1)  # (1, 2*WCo)

    # Stage-2 fused weight: dy blocks stacked along the contraction axis.
    w_s2 = jnp.concatenate([wb2[0], wb2[1], wb2[2]], axis=0)     # (3*WCo, WCo)
    b_s2 = _tile_lane(p["b2"], W)                                # (1, WCo)

    return {
        "w_s1": w_s1, "b_s1": b_s1, "w_s2": w_s2, "b_s2": b_s2,
        "gamma1": p["gamma1"].astype(jnp.float32),
        "beta1": p["beta1"].astype(jnp.float32),
        "gamma2": p["gamma2"].astype(jnp.float32),
        "beta2": p["beta2"].astype(jnp.float32),
    }


# ------------------------------- module --------------------------------------

def _forward(x_nchw, f):
    # NCHW (PyTorch) in/out; lane-dense (N, H, W*C) inside the Pallas kernels.
    x_nhwc = jnp.transpose(x_nchw, (0, 2, 3, 1)).astype(jnp.float32)
    N, H, W, Cin = x_nhwc.shape
    WCo = f["w_s2"].shape[1]
    Cout = WCo // W
    x_ld = x_nhwc.reshape(N, H, W * Cin)

    # BN1 (training-mode batch stats, biased variance) folded into scale/shift.
    m1 = jnp.mean(x_nhwc, axis=(0, 1, 2))
    v1 = jnp.mean(jnp.square(x_nhwc - m1), axis=(0, 1, 2))
    sc1 = f["gamma1"] / jnp.sqrt(v1 + EPS)
    sh1 = f["beta1"] - m1 * sc1

    y, stats = _stage1_call(x_ld, _tile_lane(sc1, W), _tile_lane(sh1, W),
                            f["w_s1"], f["b_s1"])

    # BN2 batch stats from the stage-1 per-image partial sums (tiny per-channel
    # fold; x2 itself is never re-read from HBM on the host side).
    cnt = float(N * H * W)
    s1c = stats[:, 0, :].sum(axis=0).reshape(W, Cout).sum(axis=0)
    s2c = stats[:, 1, :].sum(axis=0).reshape(W, Cout).sum(axis=0)
    m2 = s1c / cnt
    v2 = s2c / cnt - m2 * m2          # E[x^2]-E[x]^2; fine at this scale in f32
    sc2 = f["gamma2"] / jnp.sqrt(v2 + EPS)
    sh2 = f["beta2"] - m2 * sc2

    out_ld = _stage2_call(y, _tile_lane(sc2, W), _tile_lane(sh2, W),
                          f["w_s2"], f["b_s2"])

    out = out_ld.reshape(N, H, W, Cout)
    return jnp.transpose(out, (0, 3, 1, 2))                      # back to NCHW


_forward_jit = jax.jit(_forward)
_FOLD_CACHE = {}


def res_dense_block_simpler(x_nchw, params):
    """Module-like entry point: caches the host-side weight folding per params
       object and runs the fully-jitted forward (both pallas_calls inside)."""
    key = id(params)
    if key not in _FOLD_CACHE:
        W = x_nchw.shape[3]
        _FOLD_CACHE[key] = _fold_params(params, W)
    return _forward_jit(x_nchw, _FOLD_CACHE[key])


# ----------------------------- reference (JAX) --------------------------------

def _ref_forward(x_nhwc, p):
    def bn(v, g, b):
        m = jnp.mean(v, axis=(0, 1, 2))
        var = jnp.mean(jnp.square(v - m), axis=(0, 1, 2))
        return (v - m) / jnp.sqrt(var + EPS) * g + b

    def conv3(v, w, b):  # w: HWIO
        return jax.lax.conv_general_dilated(
            v, w, (1, 1), "SAME",
            dimension_numbers=("NHWC", "HWIO", "NHWC")) + b

    def conv1(v, w, b):  # w: (Cin, Cout)
        return jnp.einsum("nhwc,co->nhwo", v, w) + b

    t1 = jax.nn.relu(bn(x_nhwc, p["gamma1"], p["beta1"]))
    x1 = conv3(t1, p["w1"], p["b1"])
    x2 = x1 + conv1(x_nhwc, p["w11"], p["b11"])
    t2 = jax.nn.relu(bn(x2, p["gamma2"], p["beta2"]))
    c2 = conv3(t2, p["w2"], p["b2"])
    return x1 + c2 + conv1(x_nhwc, p["w12"], p["b12"])


# --------------------------------- main ---------------------------------------

if __name__ == "__main__":
    N, Cin, Cout, H, W = 2, 4, 8, 16, 16
    key = jax.random.PRNGKey(0)
    ks = jax.random.split(key, 13)

    # Deterministic synthetic parameters (3x3 conv weights stored in HWIO;
    # 1x1 conv weights stored as (Cin, Cout)). The module's nn.PReLU is unused
    # in forward, so it has no parameters here.
    params = {
        "gamma1": 1.0 + 0.1 * jax.random.normal(ks[0], (Cin,), jnp.float32),
        "beta1": 0.1 * jax.random.normal(ks[1], (Cin,), jnp.float32),
        "w1": 0.1 * jax.random.normal(ks[2], (3, 3, Cin, Cout), jnp.float32),
        "b1": 0.1 * jax.random.normal(ks[3], (Cout,), jnp.float32),
        "gamma2": 1.0 + 0.1 * jax.random.normal(ks[4], (Cout,), jnp.float32),
        "beta2": 0.1 * jax.random.normal(ks[5], (Cout,), jnp.float32),
        "w2": 0.1 * jax.random.normal(ks[6], (3, 3, Cout, Cout), jnp.float32),
        "b2": 0.1 * jax.random.normal(ks[7], (Cout,), jnp.float32),
        "w11": 0.1 * jax.random.normal(ks[8], (Cin, Cout), jnp.float32),
        "b11": 0.1 * jax.random.normal(ks[9], (Cout,), jnp.float32),
        "w12": 0.1 * jax.random.normal(ks[10], (Cin, Cout), jnp.float32),
        "b12": 0.1 * jax.random.normal(ks[11], (Cout,), jnp.float32),
    }

    x_nchw = jax.random.normal(ks[12], (N, Cin, H, W), jnp.float32)

    out = res_dense_block_simpler(x_nchw, params)
    out = jax.block_until_ready(out)
    assert out.shape == (N, Cout, H, W)

    # Correctness check against a pure-JAX reference of the PyTorch forward.
    ref = _ref_forward(jnp.transpose(x_nchw, (0, 2, 3, 1)), params)
    ref_nchw = jnp.transpose(ref, (0, 3, 1, 2))
    assert jnp.allclose(out, ref_nchw, atol=1e-3, rtol=1e-3), (
        float(jnp.max(jnp.abs(out - ref_nchw))))

    print("KERNEL_OK")
</pallas_src>

<mosaic_0001>
module attributes {stable_mosaic.version = 11 : i64} {
  func.func @_stage1_kernel(%arg0: i32, %arg1: memref<1x16x64xf32, #tpu.memory_space<vmem>>, %arg2: memref<1x64xf32, #tpu.memory_space<vmem>>, %arg3: memref<1x64xf32, #tpu.memory_space<vmem>>, %arg4: memref<256x256xf32, #tpu.memory_space<vmem>>, %arg5: memref<1x256xf32, #tpu.memory_space<vmem>>, %arg6: memref<1x16x256xf32, #tpu.memory_space<vmem>>, %arg7: memref<1x2x128xf32, #tpu.memory_space<vmem>>, %arg8: memref<18x64xf32, #tpu.memory_space<vmem>>) attributes {dimension_semantics = [#tpu.dimension_semantics<parallel>], iteration_bounds = array<i64: 2>, scalar_prefetch = 0 : i64, scratch_operands = 1 : i64, tpu.core_type = #tpu.core_type<tc>, window_params = [{transform_indices = @transform_0, window_bounds = array<i64: 1, 16, 64>}, {pipeline_mode = #tpu.pipeline_mode<synchronous>, transform_indices = @transform_1, window_bounds = array<i64: 1, 64>}, {pipeline_mode = #tpu.pipeline_mode<synchronous>, transform_indices = @transform_2, window_bounds = array<i64: 1, 64>}, {pipeline_mode = #tpu.pipeline_mode<synchronous>, transform_indices = @transform_3, window_bounds = array<i64: 256, 256>}, {pipeline_mode = #tpu.pipeline_mode<synchronous>, transform_indices = @transform_4, window_bounds = array<i64: 1, 256>}, {transform_indices = @transform_5, window_bounds = array<i64: 1, 16, 256>}, {transform_indices = @transform_6, window_bounds = array<i64: 1, 2, 128>}]} {
    %c0 = arith.constant 0 : index
    %c0_0 = arith.constant 0 : index
    %c0_1 = arith.constant 0 : index
    %0 = vector.load %arg1[%c0, %c0_0, %c0_1] : memref<1x16x64xf32, #tpu.memory_space<vmem>>, vector<1x16x64xf32>
    %1 = vector.shape_cast %0 : vector<1x16x64xf32> to vector<16x64xf32>
    %c0_2 = arith.constant 0 : index
    %c0_3 = arith.constant 0 : index
    %2 = vector.load %arg2[%c0_2, %c0_3] : memref<1x64xf32, #tpu.memory_space<vmem>>, vector<1x64xf32>
    %3 = vector.broadcast %2 : vector<1x64xf32> to vector<16x64xf32>
    %4 = arith.mulf %1, %3 : vector<16x64xf32>
    %c0_4 = arith.constant 0 : index
    %c0_5 = arith.constant 0 : index
    %5 = vector.load %arg3[%c0_4, %c0_5] : memref<1x64xf32, #tpu.memory_space<vmem>>, vector<1x64xf32>
    %6 = vector.broadcast %5 : vector<1x64xf32> to vector<16x64xf32>
    %7 = arith.addf %4, %6 : vector<16x64xf32>
    %cst = arith.constant 0.000000e+00 : f32
    %8 = vector.broadcast %cst : f32 to vector<16x64xf32>
    %9 = arith.maximumf %7, %8 : vector<16x64xf32>
    %cst_6 = arith.constant 0.000000e+00 : f32
    %10 = vector.broadcast %cst_6 : f32 to vector<1x64xf32>
    %c0_7 = arith.constant 0 : index
    %c0_8 = arith.constant 0 : index
    %11 = vector.load %arg8[%c0_7, %c0_8] : memref<18x64xf32, #tpu.memory_space<vmem>>, vector<1x64xf32>
    tpu.vector_store %arg8[%c0_7, %c0_8], %10 {strides = array<i32>} : memref<18x64xf32, #tpu.memory_space<vmem>>, vector<1x64xf32>,
    %c17 = arith.constant 17 : index
    %c0_9 = arith.constant 0 : index
    %12 = vector.load %arg8[%c17, %c0_9] : memref<18x64xf32, #tpu.memory_space<vmem>>, vector<1x64xf32>
    tpu.vector_store %arg8[%c17, %c0_9], %10 {strides = array<i32>} : memref<18x64xf32, #tpu.memory_space<vmem>>, vector<1x64xf32>,
    %c1 = arith.constant 1 : index
    %c0_10 = arith.constant 0 : index
    %13 = vector.load %arg8[%c1, %c0_10] : memref<18x64xf32, #tpu.memory_space<vmem>>, vector<16x64xf32>
    tpu.vector_store %arg8[%c1, %c0_10], %9 {strides = array<i32>} : memref<18x64xf32, #tpu.memory_space<vmem>>, vector<16x64xf32>,
    %c0_11 = arith.constant 0 : index
    %c0_12 = arith.constant 0 : index
    %14 = vector.load %arg8[%c0_11, %c0_12] : memref<18x64xf32, #tpu.memory_space<vmem>>, vector<16x64xf32>
    %c1_13 = arith.constant 1 : index
    %c0_14 = arith.constant 0 : index
    %15 = vector.load %arg8[%c1_13, %c0_14] : memref<18x64xf32, #tpu.memory_space<vmem>>, vector<16x64xf32>
    %c2 = arith.constant 2 : index
    %c0_15 = arith.constant 0 : index
    %16 = vector.load %arg8[%c2, %c0_15] : memref<18x64xf32, #tpu.memory_space<vmem>>, vector<16x64xf32>
    %17 = tpu.concatenate %14, %15, %16, %1 in 1 : vector<16x64xf32>, vector<16x64xf32>, vector<16x64xf32>, vector<16x64xf32> -> vector<16x256xf32>
    %c0_16 = arith.constant 0 : index
    %c0_17 = arith.constant 0 : index
    %18 = vector.load %arg4[%c0_16, %c0_17] : memref<256x256xf32, #tpu.memory_space<vmem>>, vector<256x256xf32>
    %cst_18 = arith.constant dense<0.000000e+00> : vector<16x256xf32>
    %19 = tpu.matmul %17, %18, %cst_18 {dimension_numbers = #tpu.dot_dimension_numbers<[1], [0], [0], [1], [0, 0, 1, 1], [], []>} : vector<16x256xf32>, vector<256x256xf32>, vector<16x256xf32> -> vector<16x256xf32>
    %c0_19 = arith.constant 0 : index
    %c0_20 = arith.constant 0 : index
    %20 = vector.load %arg5[%c0_19, %c0_20] : memref<1x256xf32, #tpu.memory_space<vmem>>, vector<1x256xf32>
    %21 = vector.broadcast %20 : vector<1x256xf32> to vector<16x256xf32>
    %22 = arith.addf %19, %21 : vector<16x256xf32>
    %c0_21 = arith.constant 0 : index
    %c0_22 = arith.constant 0 : index
    %c0_23 = arith.constant 0 : index
    %23 = vector.load %arg6[%c0_21, %c0_22, %c0_23] : memref<1x16x256xf32, #tpu.memory_space<vmem>>, vector<1x16x256xf32>
    %24 = vector.shape_cast %23 : vector<1x16x256xf32> to vector<16x256xf32>
    %25 = vector.shape_cast %22 : vector<16x256xf32> to vector<1x16x256xf32>
    tpu.vector_store %arg6[%c0_21, %c0_22, %c0_23], %25 {strides = array<i32>} : memref<1x16x256xf32, #tpu.memory_space<vmem>>, vector<1x16x256xf32>,
    %26 = vector.extract_strided_slice %22 {offsets = [0, 0], sizes = [16, 128], strides = [1, 1]} : vector<16x256xf32> to vector<16x128xf32>
    %cst_24 = arith.constant dense<0.000000e+00> : vector<128xf32>
    %27 = vector.multi_reduction <add>, %26, %cst_24 [0] : vector<16x128xf32> to vector<128xf32>
    %28 = vector.shape_cast %27 : vector<128xf32> to vector<1x128xf32>
    %29 = arith.mulf %26, %26 : vector<16x128xf32>
    %cst_25 = arith.constant dense<0.000000e+00> : vector<128xf32>
    %30 = vector.multi_reduction <add>, %29, %cst_25 [0] : vector<16x128xf32> to vector<128xf32>
    %31 = vector.shape_cast %30 : vector<128xf32> to vector<1x128xf32>
    %32 = tpu.concatenate %28, %31 in 0 : vector<1x128xf32>, vector<1x128xf32> -> vector<2x128xf32>
    %c0_26 = arith.constant 0 : index
    %c0_27 = arith.constant 0 : index
    %c0_28 = arith.constant 0 : index
    %33 = vector.load %arg7[%c0_26, %c0_27, %c0_28] : memref<1x2x128xf32, #tpu.memory_space<vmem>>, vector<1x2x128xf32>
    %34 = vector.shape_cast %33 : vector<1x2x128xf32> to vector<2x128xf32>
    %35 = vector.shape_cast %32 : vector<2x128xf32> to vector<1x2x128xf32>
    tpu.vector_store %arg7[%c0_26, %c0_27, %c0_28], %35 {strides = array<i32>} : memref<1x2x128xf32, #tpu.memory_space<vmem>>, vector<1x2x128xf32>,
    return
  }
  func.func @transform_0(%arg0: i32) -> (i32, i32, i32) {
    %c0_i32 = arith.constant 0 : i32
    %c0_i32_0 = arith.constant 0 : i32
    %c0_i32_1 = arith.constant 0 : i32
    return %arg0, %c0_i32, %c0_i32_0 : i32, i32, i32
  }
  func.func @transform_1(%arg0: i32) -> (i32, i32) {
    %c0_i32 = arith.constant 0 : i32
    %c0_i32_0 = arith.constant 0 : i32
    %c0_i32_1 = arith.constant 0 : i32
    return %c0_i32, %c0_i32_0 : i32, i32
  }
  func.func @transform_2(%arg0: i32) -> (i32, i32) {
    %c0_i32 = arith.constant 0 : i32
    %c0_i32_0 = arith.constant 0 : i32
    %c0_i32_1 = arith.constant 0 : i32
    return %c0_i32, %c0_i32_0 : i32, i32
  }
  func.func @transform_3(%arg0: i32) -> (i32, i32) {
    %c0_i32 = arith.constant 0 : i32
    %c0_i32_0 = arith.constant 0 : i32
    %c0_i32_1 = arith.constant 0 : i32
    return %c0_i32, %c0_i32_0 : i32, i32
  }
  func.func @transform_4(%arg0: i32) -> (i32, i32) {
    %c0_i32 = arith.constant 0 : i32
    %c0_i32_0 = arith.constant 0 : i32
    %c0_i32_1 = arith.constant 0 : i32
    return %c0_i32, %c0_i32_0 : i32, i32
  }
  func.func @transform_5(%arg0: i32) -> (i32, i32, i32) {
    %c0_i32 = arith.constant 0 : i32
    %c0_i32_0 = arith.constant 0 : i32
    %c0_i32_1 = arith.constant 0 : i32
    return %arg0, %c0_i32, %c0_i32_0 : i32, i32, i32
  }
  func.func @transform_6(%arg0: i32) -> (i32, i32, i32) {
    %c0_i32 = arith.constant 0 : i32
    %c0_i32_0 = arith.constant 0 : i32
    %c0_i32_1 = arith.constant 0 : i32
    return %arg0, %c0_i32, %c0_i32_0 : i32, i32, i32
  }
}

module attributes {stable_mosaic.version = 11 : i64} {
  func.func @_stage2_kernel(%arg0: i32, %arg1: memref<1x16x256xf32, #tpu.memory_space<vmem>>, %arg2: memref<1x128xf32, #tpu.memory_space<vmem>>, %arg3: memref<1x128xf32, #tpu.memory_space<vmem>>, %arg4: memref<384x128xf32, #tpu.memory_space<vmem>>, %arg5: memref<1x128xf32, #tpu.memory_space<vmem>>, %arg6: memref<1x16x128xf32, #tpu.memory_space<vmem>>, %arg7: memref<18x128xf32, #tpu.memory_space<vmem>>) attributes {dimension_semantics = [#tpu.dimension_semantics<parallel>], iteration_bounds = array<i64: 2>, scalar_prefetch = 0 : i64, scratch_operands = 1 : i64, tpu.core_type = #tpu.core_type<tc>, window_params = [{transform_indices = @transform_0, window_bounds = array<i64: 1, 16, 256>}, {pipeline_mode = #tpu.pipeline_mode<synchronous>, transform_indices = @transform_1, window_bounds = array<i64: 1, 128>}, {pipeline_mode = #tpu.pipeline_mode<synchronous>, transform_indices = @transform_2, window_bounds = array<i64: 1, 128>}, {pipeline_mode = #tpu.pipeline_mode<synchronous>, transform_indices = @transform_3, window_bounds = array<i64: 384, 128>}, {pipeline_mode = #tpu.pipeline_mode<synchronous>, transform_indices = @transform_4, window_bounds = array<i64: 1, 128>}, {transform_indices = @transform_5, window_bounds = array<i64: 1, 16, 128>}]} {
    %c0 = arith.constant 0 : index
    %c0_0 = arith.constant 0 : index
    %c0_1 = arith.constant 0 : index
    %0 = vector.load %arg1[%c0, %c0_0, %c0_1] : memref<1x16x256xf32, #tpu.memory_space<vmem>>, vector<1x16x256xf32>
    %1 = vector.shape_cast %0 : vector<1x16x256xf32> to vector<16x256xf32>
    %2 = vector.extract_strided_slice %1 {offsets = [0, 0], sizes = [16, 128], strides = [1, 1]} : vector<16x256xf32> to vector<16x128xf32>
    %3 = vector.extract_strided_slice %1 {offsets = [0, 128], sizes = [16, 128], strides = [1, 1]} : vector<16x256xf32> to vector<16x128xf32>
    %c0_2 = arith.constant 0 : index
    %c0_3 = arith.constant 0 : index
    %4 = vector.load %arg2[%c0_2, %c0_3] : memref<1x128xf32, #tpu.memory_space<vmem>>, vector<1x128xf32>
    %5 = vector.broadcast %4 : vector<1x128xf32> to vector<16x128xf32>
    %6 = arith.mulf %2, %5 : vector<16x128xf32>
    %c0_4 = arith.constant 0 : index
    %c0_5 = arith.constant 0 : index
    %7 = vector.load %arg3[%c0_4, %c0_5] : memref<1x128xf32, #tpu.memory_space<vmem>>, vector<1x128xf32>
    %8 = vector.broadcast %7 : vector<1x128xf32> to vector<16x128xf32>
    %9 = arith.addf %6, %8 : vector<16x128xf32>
    %cst = arith.constant 0.000000e+00 : f32
    %10 = vector.broadcast %cst : f32 to vector<16x128xf32>
    %11 = arith.maximumf %9, %10 : vector<16x128xf32>
    %cst_6 = arith.constant 0.000000e+00 : f32
    %12 = vector.broadcast %cst_6 : f32 to vector<1x128xf32>
    %c0_7 = arith.constant 0 : index
    %c0_8 = arith.constant 0 : index
    %13 = vector.load %arg7[%c0_7, %c0_8] : memref<18x128xf32, #tpu.memory_space<vmem>>, vector<1x128xf32>
    tpu.vector_store %arg7[%c0_7, %c0_8], %12 {strides = array<i32>} : memref<18x128xf32, #tpu.memory_space<vmem>>, vector<1x128xf32>,
    %c17 = arith.constant 17 : index
    %c0_9 = arith.constant 0 : index
    %14 = vector.load %arg7[%c17, %c0_9] : memref<18x128xf32, #tpu.memory_space<vmem>>, vector<1x128xf32>
    tpu.vector_store %arg7[%c17, %c0_9], %12 {strides = array<i32>} : memref<18x128xf32, #tpu.memory_space<vmem>>, vector<1x128xf32>,
    %c1 = arith.constant 1 : index
    %c0_10 = arith.constant 0 : index
    %15 = vector.load %arg7[%c1, %c0_10] : memref<18x128xf32, #tpu.memory_space<vmem>>, vector<16x128xf32>
    tpu.vector_store %arg7[%c1, %c0_10], %11 {strides = array<i32>} : memref<18x128xf32, #tpu.memory_space<vmem>>, vector<16x128xf32>,
    %c0_11 = arith.constant 0 : index
    %c0_12 = arith.constant 0 : index
    %16 = vector.load %arg7[%c0_11, %c0_12] : memref<18x128xf32, #tpu.memory_space<vmem>>, vector<16x128xf32>
    %c1_13 = arith.constant 1 : index
    %c0_14 = arith.constant 0 : index
    %17 = vector.load %arg7[%c1_13, %c0_14] : memref<18x128xf32, #tpu.memory_space<vmem>>, vector<16x128xf32>
    %c2 = arith.constant 2 : index
    %c0_15 = arith.constant 0 : index
    %18 = vector.load %arg7[%c2, %c0_15] : memref<18x128xf32, #tpu.memory_space<vmem>>, vector<16x128xf32>
    %19 = tpu.concatenate %16, %17, %18 in 1 : vector<16x128xf32>, vector<16x128xf32>, vector<16x128xf32> -> vector<16x384xf32>
    %c0_16 = arith.constant 0 : index
    %c0_17 = arith.constant 0 : index
    %20 = vector.load %arg4[%c0_16, %c0_17] : memref<384x128xf32, #tpu.memory_space<vmem>>, vector<384x128xf32>
    %cst_18 = arith.constant dense<0.000000e+00> : vector<16x128xf32>
    %21 = tpu.matmul %19, %20, %cst_18 {dimension_numbers = #tpu.dot_dimension_numbers<[1], [0], [0], [1], [0, 0, 1, 1], [], []>} : vector<16x384xf32>, vector<384x128xf32>, vector<16x128xf32> -> vector<16x128xf32>
    %c0_19 = arith.constant 0 : index
    %c0_20 = arith.constant 0 : index
    %22 = vector.load %arg5[%c0_19, %c0_20] : memref<1x128xf32, #tpu.memory_space<vmem>>, vector<1x128xf32>
    %23 = vector.broadcast %22 : vector<1x128xf32> to vector<16x128xf32>
    %24 = arith.addf %21, %23 : vector<16x128xf32>
    %25 = arith.addf %3, %24 : vector<16x128xf32>
    %c0_21 = arith.constant 0 : index
    %c0_22 = arith.constant 0 : index
    %c0_23 = arith.constant 0 : index
    %26 = vector.load %arg6[%c0_21, %c0_22, %c0_23] : memref<1x16x128xf32, #tpu.memory_space<vmem>>, vector<1x16x128xf32>
    %27 = vector.shape_cast %26 : vector<1x16x128xf32> to vector<16x128xf32>
    %28 = vector.shape_cast %25 : vector<16x128xf32> to vector<1x16x128xf32>
    tpu.vector_store %arg6[%c0_21, %c0_22, %c0_23], %28 {strides = array<i32>} : memref<1x16x128xf32, #tpu.memory_space<vmem>>, vector<1x16x128xf32>,
    return
  }
  func.func @transform_0(%arg0: i32) -> (i32, i32, i32) {
    %c0_i32 = arith.constant 0 : i32
    %c0_i32_0 = arith.constant 0 : i32
    %c0_i32_1 = arith.constant 0 : i32
    return %arg0, %c0_i32, %c0_i32_0 : i32, i32, i32
  }
  func.func @transform_1(%arg0: i32) -> (i32, i32) {
    %c0_i32 = arith.constant 0 : i32
    %c0_i32_0 = arith.constant 0 : i32
    %c0_i32_1 = arith.constant 0 : i32
    return %c0_i32, %c0_i32_0 : i32, i32
  }
  func.func @transform_2(%arg0: i32) -> (i32, i32) {
    %c0_i32 = arith.constant 0 : i32
    %c0_i32_0 = arith.constant 0 : i32
    %c0_i32_1 = arith.constant 0 : i32
    return %c0_i32, %c0_i32_0 : i32, i32
  }
  func.func @transform_3(%arg0: i32) -> (i32, i32) {
    %c0_i32 = arith.constant 0 : i32
    %c0_i32_0 = arith.constant 0 : i32
    %c0_i32_1 = arith.constant 0 : i32
    return %c0_i32, %c0_i32_0 : i32, i32
  }
  func.func @transform_4(%arg0: i32) -> (i32, i32) {
    %c0_i32 = arith.constant 0 : i32
    %c0_i32_0 = arith.constant 0 : i32
    %c0_i32_1 = arith.constant 0 : i32
    return %c0_i32, %c0_i32_0 : i32, i32
  }
  func.func @transform_5(%arg0: i32) -> (i32, i32, i32) {
    %c0_i32 = arith.constant 0 : i32
    %c0_i32_0 = arith.constant 0 : i32
    %c0_i32_1 = arith.constant 0 : i32
    return %arg0, %c0_i32, %c0_i32_0 : i32, i32, i32
  }
}

</mosaic_0001>

<llo_original>
// kernel: tile.28
$region0: #{tile.28}
  #allocation0 [shape = 's32[1]{0}', space=sflag, size = 0x4, scoped, tag = 'scoped memory for tile.28']
  %s0 = inlined_call_operand.vmem [shape: f32[4], index: 0, kind: input, shape index: {}]
  %s1 = inlined_call_operand.vmem [shape: f32[16,4], index: 1, kind: output, shape index: {}]
  // Predicated region
  $region2: #{tile.28} parent=0 // pred_check
    _
  $region3: #{tile.28} parent=0 // pred_check_branch
    %3 = sbr.rel (0) target = $region5
  $region4: #{tile.28} parent=0 // pred_region
    _
  $region5: #{tile.28} parent=0 // pred_fallthru
    _
  %v4 = vld [vmem:[%s0] ss:$0 sm:$0xff]
  %5 = vst [vmem:[%s1] sm:$0xff] %v4
  %s6 = scalar_lea.vmem %s1, 8
  %7 = vst [vmem:[%s6] sm:$0xff] %v4

// kernel: tile.29
$region0: #{tile.29}
  %s0 = inlined_call_operand.vmem [shape: f32[16,4], index: 0, kind: input, shape index: {}]
  %s1 = inlined_call_operand.vmem [shape: f32[1,64], index: 1, kind: output, shape index: {}]
  $region1: #{tile.29} parent=0
    #allocation0 [shape = 'u8[4096]{0}', space=vmem, size = 0x1000, scoped, tag = 'scoped mem for output reshape']
    %v2 = vld [vmem:[%s0] sm:$0x1]
    %vm3 = vcmask 31744
    %4 = vst.msk [vmem:[#allocation0] sm:$0x1] %vm3, %v2
    %s5 = scalar_lea.vmem %s0, 15
    %v6 = vld [vmem:[%s5] sm:$0x1]
    %7 = vrot.lane.b32.xlu0 %v6, 60
    %v8 = vpop.permute.xlu0 %7
    %vm9 = vcmask 523744
    %10 = vst.msk [vmem:[#allocation0] sm:$0x1] %vm9, %v8
    %s11 = scalar_lea.vmem %s0, 14
    %v12 = vld [vmem:[%s11] sm:$0x1]
    %13 = vrot.lane.b32.xlu0 %v12, 56
    %v14 = vpop.permute.xlu0 %13
    %vm15 = vcmask 490944
    %16 = vst.msk [vmem:[#allocation0] sm:$0x1] %vm15, %v14
    %s17 = scalar_lea.vmem %s0, 13
    %v18 = vld [vmem:[%s17] sm:$0x1]
    %19 = vrot.lane.b32.xlu0 %v18, 52
    %v20 = vpop.permute.xlu0 %19
    %vm21 = vcmask 458144
    %22 = vst.msk [vmem:[#allocation0] sm:$0x1] %vm21, %v20
    %s23 = scalar_lea.vmem %s0, 12
    %v24 = vld [vmem:[%s23] sm:$0x1]
    %25 = vrot.lane.b32.xlu0 %v24, 48
    %v26 = vpop.permute.xlu0 %25
    %vm27 = vcmask 425344
    %28 = vst.msk [vmem:[#allocation0] sm:$0x1] %vm27, %v26
    %s29 = scalar_lea.vmem %s0, 11
    %v30 = vld [vmem:[%s29] sm:$0x1]
    %31 = vrot.lane.b32.xlu0 %v30, 44
    %v32 = vpop.permute.xlu0 %31
    %vm33 = vcmask 392544
    %34 = vst.msk [vmem:[#allocation0] sm:$0x1] %vm33, %v32
    %s35 = scalar_lea.vmem %s0, 10
    %v36 = vld [vmem:[%s35] sm:$0x1]
    %37 = vrot.lane.b32.xlu0 %v36, 40
    %v38 = vpop.permute.xlu0 %37
    %vm39 = vcmask 359744
    %40 = vst.msk [vmem:[#allocation0] sm:$0x1] %vm39, %v38
    %s41 = scalar_lea.vmem %s0, 9
    %v42 = vld [vmem:[%s41] sm:$0x1]
    %43 = vrot.lane.b32.xlu0 %v42, 36
    %v44 = vpop.permute.xlu0 %43
    %vm45 = vcmask 326944
    %46 = vst.msk [vmem:[#allocation0] sm:$0x1] %vm45, %v44
    %s47 = scalar_lea.vmem %s0, 8
    %v48 = vld [vmem:[%s47] sm:$0x1]
    %49 = vrot.lane.b32.xlu0 %v48, 32
    %v50 = vpop.permute.xlu0 %49
    %vm51 = vcmask 294144
    %52 = vst.msk [vmem:[#allocation0] sm:$0x1] %vm51, %v50
    %s53 = scalar_lea.vmem %s0, 7
    %v54 = vld [vmem:[%s53] sm:$0x1]
    %55 = vrot.lane.b32.xlu0 %v54, 28
    %v56 = vpop.permute.xlu0 %55
    %vm57 = vcmask 261344
    %58 = vst.msk [vmem:[#allocation0] sm:$0x1] %vm57, %v56
    %s59 = scalar_lea.vmem %s0, 6
    %v60 = vld [vmem:[%s59] sm:$0x1]
    %61 = vrot.lane.b32.xlu0 %v60, 24
    %v62 = vpop.permute.xlu0 %61
    %vm63 = vcmask 228544
    %64 = vst.msk [vmem:[#allocation0] sm:$0x1] %vm63, %v62
    %s65 = scalar_lea.vmem %s0, 5
    %v66 = vld [vmem:[%s65] sm:$0x1]
    %67 = vrot.lane.b32.xlu0 %v66, 20
    %v68 = vpop.permute.xlu0 %67
    %vm69 = vcmask 195744
    %70 = vst.msk [vmem:[#allocation0] sm:$0x1] %vm69, %v68
    %s71 = scalar_lea.vmem %s0, 4
    %v72 = vld [vmem:[%s71] sm:$0x1]
    %73 = vrot.lane.b32.xlu0 %v72, 16
    %v74 = vpop.permute.xlu0 %73
    %vm75 = vcmask 162944
    %76 = vst.msk [vmem:[#allocation0] sm:$0x1] %vm75, %v74
    %s77 = scalar_lea.vmem %s0, 3
    %v78 = vld [vmem:[%s77] sm:$0x1]
    %79 = vrot.lane.b32.xlu0 %v78, 12
    %v80 = vpop.permute.xlu0 %79
    %vm81 = vcmask 130144
    %82 = vst.msk [vmem:[#allocation0] sm:$0x1] %vm81, %v80
    %s83 = scalar_lea.vmem %s0, 2
    %v84 = vld [vmem:[%s83] sm:$0x1]
    %85 = vrot.lane.b32.xlu0 %v84, 8
    %v86 = vpop.permute.xlu0 %85
    %vm87 = vcmask 97344
    %88 = vst.msk [vmem:[#allocation0] sm:$0x1] %vm87, %v86
    %s89 = scalar_lea.vmem %s0, 1
    %v90 = vld [vmem:[%s89] sm:$0x1]
    %91 = vrot.lane.b32.xlu0 %v90, 4
    %v92 = vpop.permute.xlu0 %91
    %vm93 = vcmask 64544
    %94 = vst.msk [vmem:[#allocation0] sm:$0x1] %vm93, %v92
    %s96 = sshllo.u32 0, 1
    %v98 = vld [vmem:[#allocation0] sm:%s96]
    %s99 = sshllo.u32 0, 1
    %100 = vst [vmem:[%s1] sm:%s99] %v98

// kernel: tile.38
$region0: #{tile.38}
  #allocation0 [shape = 's32[1]{0}', space=sflag, size = 0x4, scoped, tag = 'scoped memory for tile.38']
  %s0 = inlined_call_operand.vmem [shape: f32[8], index: 0, kind: input, shape index: {}]
  %s1 = inlined_call_operand.vmem [shape: f32[16,8], index: 1, kind: output, shape index: {}]
  // Predicated region
  $region2: #{tile.38} parent=0 // pred_check
    _
  $region3: #{tile.38} parent=0 // pred_check_branch
    %3 = sbr.rel (0) target = $region5
  $region4: #{tile.38} parent=0 // pred_region
    _
  $region5: #{tile.38} parent=0 // pred_fallthru
    _
  %v4 = vld [vmem:[%s0] ss:$0 sm:$0xff]
  %5 = vst [vmem:[%s1] sm:$0xff] %v4
  %s6 = scalar_lea.vmem %s1, 8
  %7 = vst [vmem:[%s6] sm:$0xff] %v4

// kernel: tile.39
$region0: #{tile.39}
  %s0 = inlined_call_operand.vmem [shape: f32[16,8], index: 0, kind: input, shape index: {}]
  %s1 = inlined_call_operand.vmem [shape: f32[1,128], index: 1, kind: output, shape index: {}]
  $region1: #{tile.39} parent=0
    #allocation0 [shape = 'u8[4096]{0}', space=vmem, size = 0x1000, scoped, tag = 'scoped mem for output reshape']
    %v2 = vld [vmem:[%s0] sm:$0x1]
    %vm3 = vcmask 64512
    %4 = vst.msk [vmem:[#allocation0] sm:$0x1] %vm3, %v2
    %s5 = scalar_lea.vmem %s0, 15
    %v6 = vld [vmem:[%s5] sm:$0x1]
    %7 = vrot.lane.b32.xlu0 %v6, 120
    %v8 = vpop.permute.xlu0 %7
    %vm9 = vcmask 1048512
    %10 = vst.msk [vmem:[#allocation0] sm:$0x1] %vm9, %v8
    %s11 = scalar_lea.vmem %s0, 14
    %v12 = vld [vmem:[%s11] sm:$0x1]
    %13 = vrot.lane.b32.xlu0 %v12, 112
    %v14 = vpop.permute.xlu0 %13
    %vm15 = vcmask 982912
    %16 = vst.msk [vmem:[#allocation0] sm:$0x1] %vm15, %v14
    %s17 = scalar_lea.vmem %s0, 13
    %v18 = vld [vmem:[%s17] sm:$0x1]
    %19 = vrot.lane.b32.xlu0 %v18, 104
    %v20 = vpop.permute.xlu0 %19
    %vm21 = vcmask 917312
    %22 = vst.msk [vmem:[#allocation0] sm:$0x1] %vm21, %v20
    %s23 = scalar_lea.vmem %s0, 12
    %v24 = vld [vmem:[%s23] sm:$0x1]
    %25 = vrot.lane.b32.xlu0 %v24, 96
    %v26 = vpop.permute.xlu0 %25
    %vm27 = vcmask 851712
    %28 = vst.msk [vmem:[#allocation0] sm:$0x1] %vm27, %v26
    %s29 = scalar_lea.vmem %s0, 11
    %v30 = vld [vmem:[%s29] sm:$0x1]
    %31 = vrot.lane.b32.xlu0 %v30, 88
    %v32 = vpop.permute.xlu0 %31
    %vm33 = vcmask 786112
    %34 = vst.msk [vmem:[#allocation0] sm:$0x1] %vm33, %v32
    %s35 = scalar_lea.vmem %s0, 10
    %v36 = vld [vmem:[%s35] sm:$0x1]
    %37 = vrot.lane.b32.xlu0 %v36, 80
    %v38 = vpop.permute.xlu0 %37
    %vm39 = vcmask 720512
    %40 = vst.msk [vmem:[#allocation0] sm:$0x1] %vm39, %v38
    %s41 = scalar_lea.vmem %s0, 9
    %v42 = vld [vmem:[%s41] sm:$0x1]
    %43 = vrot.lane.b32.xlu0 %v42, 72
    %v44 = vpop.permute.xlu0 %43
    %vm45 = vcmask 654912
    %46 = vst.msk [vmem:[#allocation0] sm:$0x1] %vm45, %v44
    %s47 = scalar_lea.vmem %s0, 8
    %v48 = vld [vmem:[%s47] sm:$0x1]
    %49 = vrot.lane.b32.xlu0 %v48, 64
    %v50 = vpop.permute.xlu0 %49
    %vm51 = vcmask 589312
    %52 = vst.msk [vmem:[#allocation0] sm:$0x1] %vm51, %v50
    %s53 = scalar_lea.vmem %s0, 7
    %v54 = vld [vmem:[%s53] sm:$0x1]
    %55 = vrot.lane.b32.xlu0 %v54, 56
    %v56 = vpop.permute.xlu0 %55
    %vm57 = vcmask 523712
    %58 = vst.msk [vmem:[#allocation0] sm:$0x1] %vm57, %v56
    %s59 = scalar_lea.vmem %s0, 6
    %v60 = vld [vmem:[%s59] sm:$0x1]
    %61 = vrot.lane.b32.xlu0 %v60, 48
    %v62 = vpop.permute.xlu0 %61
    %vm63 = vcmask 458112
    %64 = vst.msk [vmem:[#allocation0] sm:$0x1] %vm63, %v62
    %s65 = scalar_lea.vmem %s0, 5
    %v66 = vld [vmem:[%s65] sm:$0x1]
    %67 = vrot.lane.b32.xlu0 %v66, 40
    %v68 = vpop.permute.xlu0 %67
    %vm69 = vcmask 392512
    %70 = vst.msk [vmem:[#allocation0] sm:$0x1] %vm69, %v68
    %s71 = scalar_lea.vmem %s0, 4
    %v72 = vld [vmem:[%s71] sm:$0x1]
    %73 = vrot.lane.b32.xlu0 %v72, 32
    %v74 = vpop.permute.xlu0 %73
    %vm75 = vcmask 326912
    %76 = vst.msk [vmem:[#allocation0] sm:$0x1] %vm75, %v74
    %s77 = scalar_lea.vmem %s0, 3
    %v78 = vld [vmem:[%s77] sm:$0x1]
    %79 = vrot.lane.b32.xlu0 %v78, 24
    %v80 = vpop.permute.xlu0 %79
    %vm81 = vcmask 261312
    %82 = vst.msk [vmem:[#allocation0] sm:$0x1] %vm81, %v80
    %s83 = scalar_lea.vmem %s0, 2
    %v84 = vld [vmem:[%s83] sm:$0x1]
    %85 = vrot.lane.b32.xlu0 %v84, 16
    %v86 = vpop.permute.xlu0 %85
    %vm87 = vcmask 195712
    %88 = vst.msk [vmem:[#allocation0] sm:$0x1] %vm87, %v86
    %s89 = scalar_lea.vmem %s0, 1
    %v90 = vld [vmem:[%s89] sm:$0x1]
    %91 = vrot.lane.b32.xlu0 %v90, 8
    %v92 = vpop.permute.xlu0 %91
    %vm93 = vcmask 130112
    %94 = vst.msk [vmem:[#allocation0] sm:$0x1] %vm93, %v92
    %s96 = sshllo.u32 0, 1
    %v98 = vld [vmem:[#allocation0] sm:%s96]
    %s99 = sshllo.u32 0, 1
    %100 = vst [vmem:[%s1] sm:%s99] %v98

// kernel: _forward.2
$region0: #{_forward.2}
  #allocation0 [shape = 'u32[]', space=smem, size = 0x4, offset = 0x4, fixed_abs, tag = 'smem constant byte address 0x4 - core index']
  #allocation1 [shape = 'u32[144,128]{1,0:T(1,128)}', space=vmem, size = 0x12000, scoped, tag = 'internal scratch']
  #allocation2 [shape = 'f32[18,64]{1,0:T(8,128)}', space=vmem, size = 0x3000, scoped, tag = 'scratch operand']
  %s0 = inlined_call_operand.vmem [shape: f32[2,16,64], index: 0, kind: input, shape index: {}]
  %s1 = inlined_call_operand.vmem [shape: f32[1,64], index: 1, kind: input, shape index: {}]
  %s2 = inlined_call_operand.vmem [shape: f32[1,64], index: 2, kind: input, shape index: {}]
  %s3 = inlined_call_operand.vmem [shape: f32[256,256], index: 3, kind: input, shape index: {}]
  %s4 = inlined_call_operand.vmem [shape: f32[1,256], index: 4, kind: input, shape index: {}]
  %s5 = inlined_call_operand.vmem [shape: f32[2,16,256], index: 5, kind: output, shape index: {0}]
  %s6 = inlined_call_operand.vmem [shape: f32[2,2,128], index: 6, kind: output, shape index: {1}]
  %7 = xla_tuple %s5, %s6
  %s8 = sld [smem:[#allocation0]]
  $region61: #{_forward.2} parent=0
    _
  %s10 = ssub.s32 1, %s8
  %s11 = scalar_select 0, %s10, %s8
  loop: start=0, step=1, limit=4
  $region2: #{_forward.2} parent=0 // loop_pre_header
    _
  $region3: #{_forward.2} parent=0 // loop_header
    %s13 = sphi 0, %s17
    %p14 = scmp.ge.s32.totalorder %s13, 4
    %s23 = sphi 0, %s25
    %s26 = sphi 0, %s23
    %s27 = sphi 0, %s26
    %s43 = sphi 0, %s27
    %s47 = sphi 0, %s47
    %s49 = sphi 0, %s47
    %s50 = sphi 0, %s49
    %s64 = sphi 0, %s50
    %s68 = sphi 0, %s68
    %s70 = sphi 0, %s68
    %s71 = sphi 0, %s70
    %s85 = sphi 0, %s71
    %s89 = sphi 0, %s89
    %s91 = sphi 0, %s89
    %s92 = sphi 0, %s91
    %s106 = sphi 0, %s92
    %s110 = sphi 0, %s110
    %s112 = sphi 0, %s110
    %s113 = sphi 0, %s112
    %s127 = sphi 0, %s113
    %s133 = sphi 0, %s135
    %s136 = sphi 0, %s133
    %s137 = sphi 0, %s136
    %s153 = sphi 0, %s137
    %s159 = sphi 0, %s161
    %s162 = sphi 0, %s159
    %s163 = sphi 0, %s162
    %s179 = sphi 0, %s163
  $region4: #{_forward.2} parent=0 // loop_header_branch
    %16 = sbr.rel (%p14) target = $region8
  $region5: #{_forward.2} parent=0 // loop_body
    %s18 = ssub.s32 %s13, 1
    %s19 = ssub.s32 %s13, 2
    %s20 = sadd.s32 %s13, 1
    %s21 = ssub.s32 %s13, %s20
    %p22 = scmp.eq.s32.totalorder %s21, 0
    %s24 = sadd.s32 %s23, 1
    %s25 = scalar_select %p22, %s23, %s24
    %p28 = pneg %p22
    %p29 = scmp.eq.s32.totalorder %s13, 1
    %p30 = por %p28, %p29
    %p31 = scmp.ne.s32.totalorder %s23, %s26
    %p32 = scmp.eq.s32.totalorder %s13, 0
    %p33 = por %p31, %p32
    %p34 = scmp.ne.s32.totalorder %s23, %s26
    %p35 = scmp.eq.s32.totalorder %s18, 1
    %p36 = por %p34, %p35
    %p37 = scmp.ne.s32.totalorder %s26, %s27
    %p38 = scmp.eq.s32.totalorder %s18, 0
    %p39 = por %p37, %p38
    %p40 = scmp.ne.s32.totalorder %s26, %s27
    %p41 = scmp.eq.s32.totalorder %s19, 1
    %p42 = por %p40, %p41
    %p44 = scmp.ne.s32.totalorder %s27, %s43
    %p45 = scmp.eq.s32.totalorder %s19, 0
    %p46 = por %p44, %p45
    %s48 = sadd.s32 %s47, 1
    %p51 = scmp.eq.s32.totalorder %s13, 1
    %p52 = scmp.ne.s32.totalorder %s47, %s49
    %p53 = scmp.eq.s32.totalorder %s13, 0
    %p54 = por %p52, %p53
    %p55 = scmp.ne.s32.totalorder %s47, %s49
    %p56 = scmp.eq.s32.totalorder %s18, 1
    %p57 = por %p55, %p56
    %p58 = scmp.ne.s32.totalorder %s49, %s50
    %p59 = scmp.eq.s32.totalorder %s18, 0
    %p60 = por %p58, %p59
    %p61 = scmp.ne.s32.totalorder %s49, %s50
    %p62 = scmp.eq.s32.totalorder %s19, 1
    %p63 = por %p61, %p62
    %p65 = scmp.ne.s32.totalorder %s50, %s64
    %p66 = scmp.eq.s32.totalorder %s19, 0
    %p67 = por %p65, %p66
    %s69 = sadd.s32 %s68, 1
    %p72 = scmp.eq.s32.totalorder %s13, 1
    %p73 = scmp.ne.s32.totalorder %s68, %s70
    %p74 = scmp.eq.s32.totalorder %s13, 0
    %p75 = por %p73, %p74
    %p76 = scmp.ne.s32.totalorder %s68, %s70
    %p77 = scmp.eq.s32.totalorder %s18, 1
    %p78 = por %p76, %p77
    %p79 = scmp.ne.s32.totalorder %s70, %s71
    %p80 = scmp.eq.s32.totalorder %s18, 0
    %p81 = por %p79, %p80
    %p82 = scmp.ne.s32.totalorder %s70, %s71
    %p83 = scmp.eq.s32.totalorder %s19, 1
    %p84 = por %p82, %p83
    %p86 = scmp.ne.s32.totalorder %s71, %s85
    %p87 = scmp.eq.s32.totalorder %s19, 0
    %p88 = por %p86, %p87
    %s90 = sadd.s32 %s89, 1
    %p93 = scmp.eq.s32.totalorder %s13, 1
    %p94 = scmp.ne.s32.totalorder %s89, %s91
    %p95 = scmp.eq.s32.totalorder %s13, 0
    %p96 = por %p94, %p95
    %p97 = scmp.ne.s32.totalorder %s89, %s91
    %p98 = scmp.eq.s32.totalorder %s18, 1
    %p99 = por %p97, %p98
    %p100 = scmp.ne.s32.totalorder %s91, %s92
    %p101 = scmp.eq.s32.totalorder %s18, 0
    %p102 = por %p100, %p101
    %p103 = scmp.ne.s32.totalorder %s91, %s92
    %p104 = scmp.eq.s32.totalorder %s19, 1
    %p105 = por %p103, %p104
    %p107 = scmp.ne.s32.totalorder %s92, %s106
    %p108 = scmp.eq.s32.totalorder %s19, 0
    %p109 = por %p107, %p108
    %s111 = sadd.s32 %s110, 1
    %p114 = scmp.eq.s32.totalorder %s13, 1
    %p115 = scmp.ne.s32.totalorder %s110, %s112
    %p116 = scmp.eq.s32.totalorder %s13, 0
    %p117 = por %p115, %p116
    %p118 = scmp.ne.s32.totalorder %s110, %s112
    %p119 = scmp.eq.s32.totalorder %s18, 1
    %p120 = por %p118, %p119
    %p121 = scmp.ne.s32.totalorder %s112, %s113
    %p122 = scmp.eq.s32.totalorder %s18, 0
    %p123 = por %p121, %p122
    %p124 = scmp.ne.s32.totalorder %s112, %s113
    %p125 = scmp.eq.s32.totalorder %s19, 1
    %p126 = por %p124, %p125
    %p128 = scmp.ne.s32.totalorder %s113, %s127
    %p129 = scmp.eq.s32.totalorder %s19, 0
    %p130 = por %p128, %p129
    %s131 = ssub.s32 %s13, %s20
    %p132 = scmp.eq.s32.totalorder %s131, 0
    %s134 = sadd.s32 %s133, 1
    %s135 = scalar_select %p132, %s133, %s134
    %p138 = pneg %p132
    %p139 = scmp.eq.s32.totalorder %s13, 1
    %p140 = por %p138, %p139
    %p141 = scmp.ne.s32.totalorder %s133, %s136
    %p142 = scmp.eq.s32.totalorder %s13, 0
    %p143 = por %p141, %p142
    %p144 = scmp.ne.s32.totalorder %s133, %s136
    %p145 = scmp.eq.s32.totalorder %s18, 1
    %p146 = por %p144, %p145
    %p147 = scmp.ne.s32.totalorder %s136, %s137
    %p148 = scmp.eq.s32.totalorder %s18, 0
    %p149 = por %p147, %p148
    %p150 = scmp.ne.s32.totalorder %s136, %s137
    %p151 = scmp.eq.s32.totalorder %s19, 1
    %p152 = por %p150, %p151
    %p154 = scmp.ne.s32.totalorder %s137, %s153
    %p155 = scmp.eq.s32.totalorder %s19, 0
    %p156 = por %p154, %p155
    %s157 = ssub.s32 %s13, %s20
    %p158 = scmp.eq.s32.totalorder %s157, 0
    %s160 = sadd.s32 %s159, 1
    %s161 = scalar_select %p158, %s159, %s160
    %p164 = pneg %p158
    %p165 = scmp.eq.s32.totalorder %s13, 1
    %p166 = por %p164, %p165
    %p167 = scmp.ne.s32.totalorder %s159, %s162
    %p168 = scmp.eq.s32.totalorder %s13, 0
    %p169 = por %p167, %p168
    %p170 = scmp.ne.s32.totalorder %s159, %s162
    %p171 = scmp.eq.s32.totalorder %s18, 1
    %p172 = por %p170, %p171
    %p173 = scmp.ne.s32.totalorder %s162, %s163
    %p174 = scmp.eq.s32.totalorder %s18, 0
    %p175 = por %p173, %p174
    %p176 = scmp.ne.s32.totalorder %s162, %s163
    %p177 = scmp.eq.s32.totalorder %s19, 1
    %p178 = por %p176, %p177
    %p180 = scmp.ne.s32.totalorder %s163, %s179
    %p181 = scmp.eq.s32.totalorder %s19, 0
    %p182 = por %p180, %p181
    %p183 = scmp.le.s32.totalorder 1, %s13
    %p184 = scmp.lt.s32.totalorder %s13, 3
    %p185 = pnand %p183, %p184
    %p186 = pneg %p185
    // Predicated region
    $region9: #{_forward.2} parent=5 // pred_check
      _
    $region10: #{_forward.2} parent=5 // pred_check_branch
      %188 = sbr.rel (%p185) target = $region12
    $region11: #{_forward.2} parent=5 // pred_region
      %s189 = ssub.s32 %s13, 1
      // Predicated region
      $region13: #{_forward.2} parent=11 // pred_check
        %p190 = pneg %p60
      $region14: #{_forward.2} parent=11 // pred_check_branch
        %192 = sbr.rel (%p190) target = $region16
      $region15: #{_forward.2} parent=11 // pred_region
        _
      $region16: #{_forward.2} parent=11 // pred_fallthru
        _
      // Predicated region
      $region17: #{_forward.2} parent=11 // pred_check
        %p193 = pneg %p81
      $region18: #{_forward.2} parent=11 // pred_check_branch
        %195 = sbr.rel (%p193) target = $region20
      $region19: #{_forward.2} parent=11 // pred_region
        _
      $region20: #{_forward.2} parent=11 // pred_fallthru
        _
      // Predicated region
      $region21: #{_forward.2} parent=11 // pred_check
        %p196 = pneg %p102
      $region22: #{_forward.2} parent=11 // pred_check_branch
        %198 = sbr.rel (%p196) target = $region24
      $region23: #{_forward.2} parent=11 // pred_region
        _
      $region24: #{_forward.2} parent=11 // pred_fallthru
        _
      // Predicated region
      $region25: #{_forward.2} parent=11 // pred_check
        %p199 = pneg %p123
      $region26: #{_forward.2} parent=11 // pred_check_branch
        %201 = sbr.rel (%p199) target = $region28
      $region27: #{_forward.2} parent=11 // pred_region
        _
      $region28: #{_forward.2} parent=11 // pred_fallthru
        _
    $region12: #{_forward.2} parent=5 // pred_fallthru
      _
    %p202 = scmp.lt.s32.totalorder %s13, 2
    // Predicated region
    $region29: #{_forward.2} parent=5 // pred_check
      %p203 = pneg %p202
    $region30: #{_forward.2} parent=5 // pred_check_branch
      %205 = sbr.rel (%p203) target = $region32
    $region31: #{_forward.2} parent=5 // pred_region
      // Predicated region
      $region33: #{_forward.2} parent=31 // pred_check
        %p206 = pneg %p33
      $region34: #{_forward.2} parent=31 // pred_check_branch
        %208 = sbr.rel (%p206) target = $region36
      $region35: #{_forward.2} parent=31 // pred_region
        %p209 = scmp.lt.s32.totalorder %s13, 1
        %s210 = scalar_select %p209, %s13, 1
        %s211 = smul.addr %s210, 2
        %s212 = smul.addr %s211, 8
        %s213 = scalar_lea.vmem %s0, %s212
      $region36: #{_forward.2} parent=31 // pred_fallthru
        _
    $region32: #{_forward.2} parent=5 // pred_fallthru
      _
    %p214 = scmp.le.s32.totalorder 1, %s13
    %p215 = scmp.lt.s32.totalorder %s13, 3
    %p216 = pnand %p214, %p215
    %p217 = pneg %p216
    // Predicated region
    $region37: #{_forward.2} parent=5 // pred_check
      _
    $region38: #{_forward.2} parent=5 // pred_check_branch
      %219 = sbr.rel (%p216) target = $region40
    $region39: #{_forward.2} parent=5 // pred_region
      %s220 = ssub.s32 %s13, 1
      %p221 = scmp.lt.s32.totalorder %s18, 1
      %s222 = scalar_select %p221, %s18, 1
      %s223 = smul.addr %s222, 2
      %s224 = smul.addr %s223, 8
      %s225 = scalar_lea.vmem %s0, %s224
      %p226 = pneg %p39
      %p227 = pneg %p36
      %p228 = pneg %p60
      %p229 = pneg %p57
      %p230 = pneg %p81
      %p231 = pneg %p78
      %p232 = pneg %p102
      %p233 = pneg %p99
      %p234 = pneg %p123
      %p235 = pneg %p120
      %p236 = pneg %p149
      %p237 = pneg %p146
      %p238 = scmp.lt.s32.totalorder %s18, 1
      %s239 = scalar_select %p238, %s18, 1
      %s240 = smul.addr %s239, 4
      %s241 = smul.addr %s240, 8
      %s242 = scalar_lea.vmem %s5, %s241
      %p243 = pneg %p175
      %p244 = pneg %p172
      %p245 = scmp.lt.s32.totalorder %s18, 1
      %s246 = scalar_select %p245, %s18, 1
      %s247 = smul.addr %s246, 2
      %s248 = scalar_lea.vmem %s6, %s247
      %p249 = scmp.lt.s32.totalorder %s18, 1
      %s250 = scalar_select %p249, %s18, 1
      %s251 = smul.addr %s250, 2
      %s252 = smul.addr %s251, 8
      %s253 = scalar_lea.vmem %s0, %s252
      %p254 = scmp.lt.s32.totalorder %s18, 1
      %s255 = scalar_select %p254, %s18, 1
      %s256 = smul.addr %s255, 4
      %s257 = smul.addr %s256, 8
      %s258 = scalar_lea.vmem %s5, %s257
      %p259 = scmp.lt.s32.totalorder %s18, 1
      %s260 = scalar_select %p259, %s18, 1
      %s261 = smul.addr %s260, 2
      %s262 = scalar_lea.vmem %s6, %s261
      %v263 = vld [vmem:[%s253] sm:$0xff]
      %v264 = vld [vmem:[%s253 + $0x8] sm:$0xff]
      %v265 = vld [vmem:[%s1] sm:$0x1]
      %v267 = vlaneseq
      %v268 = vshrl.u32 %v267, 7
      %v269 = vsub.s32 0, %v268
      %v270 = vrot.slane %v265, %v269
      %v272 = vmul.f32 %v263, %v270
      %v273 = vmul.f32 %v264, %v270
      %v274 = vld [vmem:[%s2] sm:$0x1]
      %v276 = vlaneseq
      %v277 = vshrl.u32 %v276, 7
      %v278 = vsub.s32 0, %v277
      %v279 = vrot.slane %v274, %v278
      %v281 = vadd.f32 %v272, %v279
      %v282 = vadd.f32 %v273, %v279
      %v283 = vmax.f32 %v281, 0.0
      %v284 = vmax.f32 %v282, 0.0
      %vm285 = vcmask 516096
      %286 = vst.msk [vmem:[#allocation2] sm:$0x1] %vm285, 0.0
      %287 = vst.msk [vmem:[#allocation2 + $0x11] sm:$0x1] %vm285, 0.0
      %vm288 = vcmask 523264
      %289 = vst.msk [vmem:[#allocation2 + $0x1] sm:$0xff] %vm288, %v283
      %290 = vst.msk [vmem:[#allocation2 + $0x9] sm:$0xff] %vm288, %v284
      %v291 = vld [vmem:[#allocation2] sm:$0xff]
      %v292 = vld [vmem:[#allocation2 + $0x8] sm:$0xff]
      %v293 = vld [vmem:[#allocation2 + $0x1] sm:$0xff]
      %v294 = vld [vmem:[#allocation2 + $0x9] sm:$0xff]
      %v295 = vld [vmem:[#allocation2 + $0x2] sm:$0xff]
      %v296 = vld [vmem:[#allocation2 + $0xa] sm:$0xff]
      %299 = vrot.lane.b32.xlu0 %v293, 64
      %v300 = vpop.permute.xlu0 %299
      %301 = vrot.lane.b32.xlu0 %v294, 64
      %v302 = vpop.permute.xlu0 %301
      %307 = vrot.lane.b32.xlu0 %v263, 64
      %v308 = vpop.permute.xlu0 %307
      %309 = vrot.lane.b32.xlu0 %v264, 64
      %v310 = vpop.permute.xlu0 %309
      %v313 = vsel %vm288, %v291, %v300
      %v314 = vsel %vm288, %v292, %v302
      %v315 = vsel %vm288, %v295, %v308
      %v316 = vsel %vm288, %v296, %v310
      %v317 = vld [vmem:[%s3] sm:$0xff]
      %v318 = vld [vmem:[%s3 + $0x8] sm:$0xff]
      %v319 = vld [vmem:[%s3 + $0x10] sm:$0xff]
      %v320 = vld [vmem:[%s3 + $0x18] sm:$0xff]
      %v321 = vld [vmem:[%s3 + $0x20] sm:$0xff]
      %v322 = vld [vmem:[%s3 + $0x28] sm:$0xff]
      %v323 = vld [vmem:[%s3 + $0x30] sm:$0xff]
      %v324 = vld [vmem:[%s3 + $0x38] sm:$0xff]
      %v325 = vld [vmem:[%s3 + $0x40] sm:$0xff]
      %v326 = vld [vmem:[%s3 + $0x48] sm:$0xff]
      %v327 = vld [vmem:[%s3 + $0x50] sm:$0xff]
      %v328 = vld [vmem:[%s3 + $0x58] sm:$0xff]
      %v329 = vld [vmem:[%s3 + $0x60] sm:$0xff]
      %v330 = vld [vmem:[%s3 + $0x68] sm:$0xff]
      %v331 = vld [vmem:[%s3 + $0x70] sm:$0xff]
      %v332 = vld [vmem:[%s3 + $0x78] sm:$0xff]
      %v333 = vld [vmem:[%s3 + $0x80] sm:$0xff]
      %v334 = vld [vmem:[%s3 + $0x88] sm:$0xff]
      %v335 = vld [vmem:[%s3 + $0x90] sm:$0xff]
      %v336 = vld [vmem:[%s3 + $0x98] sm:$0xff]
      %v337 = vld [vmem:[%s3 + $0xa0] sm:$0xff]
      %v338 = vld [vmem:[%s3 + $0xa8] sm:$0xff]
      %v339 = vld [vmem:[%s3 + $0xb0] sm:$0xff]
      %v340 = vld [vmem:[%s3 + $0xb8] sm:$0xff]
      %v341 = vld [vmem:[%s3 + $0xc0] sm:$0xff]
      %v342 = vld [vmem:[%s3 + $0xc8] sm:$0xff]
      %v343 = vld [vmem:[%s3 + $0xd0] sm:$0xff]
      %v344 = vld [vmem:[%s3 + $0xd8] sm:$0xff]
      %v345 = vld [vmem:[%s3 + $0xe0] sm:$0xff]
      %v346 = vld [vmem:[%s3 + $0xe8] sm:$0xff]
      %v347 = vld [vmem:[%s3 + $0xf0] sm:$0xff]
      %v348 = vld [vmem:[%s3 + $0xf8] sm:$0xff]
      %v349 = vld [vmem:[%s3 + $0x100] sm:$0xff]
      %v350 = vld [vmem:[%s3 + $0x108] sm:$0xff]
      %v351 = vld [vmem:[%s3 + $0x110] sm:$0xff]
      %v352 = vld [vmem:[%s3 + $0x118] sm:$0xff]
      %v353 = vld [vmem:[%s3 + $0x120] sm:$0xff]
      %v354 = vld [vmem:[%s3 + $0x128] sm:$0xff]
      %v355 = vld [vmem:[%s3 + $0x130] sm:$0xff]
      %v356 = vld [vmem:[%s3 + $0x138] sm:$0xff]
      %v357 = vld [vmem:[%s3 + $0x140] sm:$0xff]
      %v358 = vld [vmem:[%s3 + $0x148] sm:$0xff]
      %v359 = vld [vmem:[%s3 + $0x150] sm:$0xff]
      %v360 = vld [vmem:[%s3 + $0x158] sm:$0xff]
      %v361 = vld [vmem:[%s3 + $0x160] sm:$0xff]
      %v362 = vld [vmem:[%s3 + $0x168] sm:$0xff]
      %v363 = vld [vmem:[%s3 + $0x170] sm:$0xff]
      %v364 = vld [vmem:[%s3 + $0x178] sm:$0xff]
      %v365 = vld [vmem:[%s3 + $0x180] sm:$0xff]
      %v366 = vld [vmem:[%s3 + $0x188] sm:$0xff]
      %v367 = vld [vmem:[%s3 + $0x190] sm:$0xff]
      %v368 = vld [vmem:[%s3 + $0x198] sm:$0xff]
      %v369 = vld [vmem:[%s3 + $0x1a0] sm:$0xff]
      %v370 = vld [vmem:[%s3 + $0x1a8] sm:$0xff]
      %v371 = vld [vmem:[%s3 + $0x1b0] sm:$0xff]
      %v372 = vld [vmem:[%s3 + $0x1b8] sm:$0xff]
      %v373 = vld [vmem:[%s3 + $0x1c0] sm:$0xff]
      %v374 = vld [vmem:[%s3 + $0x1c8] sm:$0xff]
      %v375 = vld [vmem:[%s3 + $0x1d0] sm:$0xff]
      %v376 = vld [vmem:[%s3 + $0x1d8] sm:$0xff]
      %v377 = vld [vmem:[%s3 + $0x1e0] sm:$0xff]
      %v378 = vld [vmem:[%s3 + $0x1e8] sm:$0xff]
      %v379 = vld [vmem:[%s3 + $0x1f0] sm:$0xff]
      %v380 = vld [vmem:[%s3 + $0x1f8] sm:$0xff]
      %v381 = vld [vmem:[%s4] sm:$0x3]
      %v383 = vlaneseq
      %v384 = vshrl.u32 %v383, 7
      %v385 = vsub.s32 0, %v384
      %v386 = vrot.slane %v381, %v385
      %v387 = vlaneseq
      %v388 = vshrl.u32 %v387, 7
      %v389 = vsub.s32 1, %v388
      %v390 = vrot.slane %v381, %v389
      %393 = vmatprep.subr.mxu0 %v318
      %394 = vmatpush1.msra.mxu0 %v317
      %395 = vmatprep.subr.mxu0 %v320
      %396 = vmatpush1.msra.mxu0 %v319
      %397 = vmatprep.subr.mxu0 %v322
      %398 = vmatpush1.msra.mxu0 %v321
      %399 = vmatprep.subr.mxu0 %v324
      %400 = vmatpush1.msra.mxu0 %v323
      %401 = vmatprep.subr.mxu0 %v326
      %402 = vmatpush1.msra.mxu0 %v325
      %403 = vmatprep.subr.mxu0 %v328
      %404 = vmatpush1.msra.mxu0 %v327
      %405 = vmatprep.subr.mxu0 %v330
      %406 = vmatpush1.msra.mxu0 %v329
      %407 = vmatprep.subr.mxu0 %v332
      %408 = vmatpush1.msra.mxu0 %v331
      %409 = vmatprep.subr.mxu0 %v334
      %410 = vmatpush1.msra.mxu0 %v333
      %411 = vmatprep.subr.mxu0 %v336
      %412 = vmatpush1.msra.mxu0 %v335
      %413 = vmatprep.subr.mxu0 %v338
      %414 = vmatpush1.msra.mxu0 %v337
      %415 = vmatprep.subr.mxu0 %v340
      %416 = vmatpush1.msra.mxu0 %v339
      %417 = vmatprep.subr.mxu0 %v342
      %418 = vmatpush1.msra.mxu0 %v341
      %419 = vmatprep.subr.mxu0 %v344
      %420 = vmatpush1.msra.mxu0 %v343
      %421 = vmatprep.subr.mxu0 %v346
      %422 = vmatpush1.msra.mxu0 %v345
      %423 = vmatprep.subr.mxu0 %v348
      %424 = vmatpush1.msra.mxu0 %v347
      %425 = vmatprep.subr.mxu0 %v350
      %426 = vmatpush1.msra.mxu0 %v349
      %427 = vmatprep.subr.mxu0 %v352
      %428 = vmatpush1.msra.mxu0 %v351
      %429 = vmatprep.subr.mxu0 %v354
      %430 = vmatpush1.msra.mxu0 %v353
      %431 = vmatprep.subr.mxu0 %v356
      %432 = vmatpush1.msra.mxu0 %v355
      %433 = vmatprep.subr.mxu0 %v358
      %434 = vmatpush1.msra.mxu0 %v357
      %435 = vmatprep.subr.mxu0 %v360
      %436 = vmatpush1.msra.mxu0 %v359
      %437 = vmatprep.subr.mxu0 %v362
      %438 = vmatpush1.msra.mxu0 %v361
      %439 = vmatprep.subr.mxu0 %v364
      %440 = vmatpush1.msra.mxu0 %v363
      %441 = vmatprep.subr.mxu0 %v366
      %442 = vmatpush1.msra.mxu0 %v365
      %443 = vmatprep.subr.mxu0 %v368
      %444 = vmatpush1.msra.mxu0 %v367
      %445 = vmatprep.subr.mxu0 %v370
      %446 = vmatpush1.msra.mxu0 %v369
      %447 = vmatprep.subr.mxu0 %v372
      %448 = vmatpush1.msra.mxu0 %v371
      %449 = vmatprep.subr.mxu0 %v374
      %450 = vmatpush1.msra.mxu0 %v373
      %451 = vmatprep.subr.mxu0 %v376
      %452 = vmatpush1.msra.mxu0 %v375
      %453 = vmatprep.subr.mxu0 %v378
      %454 = vmatpush1.msra.mxu0 %v377
      %455 = vmatprep.subr.mxu0 %v380
      %456 = vmatpush1.msra.mxu0 %v379
      %457 = vmatprep.mubr.f32.mxu0 %v315
      %458 = vmatmul.mubr.f32.gmra.mrb[0].mxu0 %v313
      %v459 = vpop.f32.mrb[0].mxu0
      %v460 = vadd.f32 %v386, %v459
      %v461 = vpop.f32.mrb[0].mxu0
      %v462 = vadd.f32 %v390, %v461
      %463 = vmatprep.mubr.f32.mxu0 %v316
      %464 = vmatmul.mubr.f32.gmra.mrb[0].mxu0 %v314
      %v465 = vpop.f32.mrb[0].mxu0
      %v466 = vadd.f32 %v386, %v465
      %v467 = vpop.f32.mrb[0].mxu0
      %v468 = vadd.f32 %v390, %v467
      %469 = vdwg.mxu0
      %470 = vst [vmem:[%s258] sm:$0xff] %v460
      %471 = vst [vmem:[%s258 + $0x8] sm:$0xff] %v462
      %472 = vst [vmem:[%s258 + $0x10] sm:$0xff] %v466
      %473 = vst [vmem:[%s258 + $0x18] sm:$0xff] %v468
      %v474 = vadd.f32 %v460, %v466
      %v475 = vrot.slane %v474, 4
      %v476 = vadd.f32 %v474, %v475
      %v477 = vrot.slane %v476, 2
      %v478 = vadd.f32 %v476, %v477
      %v479 = vrot.slane %v478, 1
      %v480 = vadd.f32 %v478, %v479
      %v481 = vmul.f32 %v460, %v460
      %v482 = vmul.f32 %v466, %v466
      %v483 = vadd.f32 %v481, %v482
      %v484 = vrot.slane %v483, 4
      %v485 = vadd.f32 %v483, %v484
      %v486 = vrot.slane %v485, 2
      %v487 = vadd.f32 %v485, %v486
      %v488 = vrot.slane %v487, 1
      %v489 = vadd.f32 %v487, %v488
      %vm490 = vcmask 1040384
      %v491 = vsel %vm490, %v480, %v489
      %492 = vst [vmem:[%s262] sm:$0x3] %v491
      %p493 = scmp.lt.s32.totalorder %s18, 1
      %s494 = scalar_select %p493, %s18, 1
      %s495 = smul.addr %s494, 4
      %s496 = smul.addr %s495, 8
      %s497 = scalar_lea.vmem %s5, %s496
      %p498 = scmp.lt.s32.totalorder %s18, 1
      %s499 = scalar_select %p498, %s18, 1
      %s500 = smul.addr %s499, 2
      %s501 = scalar_lea.vmem %s6, %s500
      // Predicated region
      $region41: #{_forward.2} parent=39 // pred_check
        %p502 = pneg %p146
      $region42: #{_forward.2} parent=39 // pred_check_branch
        %504 = sbr.rel (%p502) target = $region44
      $region43: #{_forward.2} parent=39 // pred_region
        _
      $region44: #{_forward.2} parent=39 // pred_fallthru
        _
      // Predicated region
      $region45: #{_forward.2} parent=39 // pred_check
        %p505 = pneg %p172
      $region46: #{_forward.2} parent=39 // pred_check_branch
        %507 = sbr.rel (%p505) target = $region48
      $region47: #{_forward.2} parent=39 // pred_region
        _
      $region48: #{_forward.2} parent=39 // pred_fallthru
        _
    $region40: #{_forward.2} parent=5 // pred_fallthru
      _
    %p508 = scmp.le.s32.totalorder 2, %s13
    // Predicated region
    $region49: #{_forward.2} parent=5 // pred_check
      %p509 = pneg %p508
    $region50: #{_forward.2} parent=5 // pred_check_branch
      %511 = sbr.rel (%p509) target = $region52
    $region51: #{_forward.2} parent=5 // pred_region
      %s512 = ssub.s32 %s13, 2
      // Predicated region
      $region53: #{_forward.2} parent=51 // pred_check
        %p513 = pneg %p152
      $region54: #{_forward.2} parent=51 // pred_check_branch
        %515 = sbr.rel (%p513) target = $region56
      $region55: #{_forward.2} parent=51 // pred_region
        %p516 = scmp.lt.s32.totalorder %s19, 1
        %s517 = scalar_select %p516, %s19, 1
        %s518 = smul.addr %s517, 4
        %s519 = smul.addr %s518, 8
        %s520 = scalar_lea.vmem %s5, %s519
      $region56: #{_forward.2} parent=51 // pred_fallthru
        _
      // Predicated region
      $region57: #{_forward.2} parent=51 // pred_check
        %p521 = pneg %p178
      $region58: #{_forward.2} parent=51 // pred_check_branch
        %523 = sbr.rel (%p521) target = $region60
      $region59: #{_forward.2} parent=51 // pred_region
        %p524 = scmp.lt.s32.totalorder %s19, 1
        %s525 = scalar_select %p524, %s19, 1
        %s526 = smul.addr %s525, 2
        %s527 = scalar_lea.vmem %s6, %s526
      $region60: #{_forward.2} parent=51 // pred_fallthru
        _
    $region52: #{_forward.2} parent=5 // pred_fallthru
      _
  $region6: #{_forward.2} parent=0 // loop_footer
    %s17 = sadd.s32 1, %s13
  $region7: #{_forward.2} parent=0 // loop_footer_branch
    %12 = sbr.rel target = $region3
  $region8: #{_forward.2} parent=0 // loop_exit
    _

// kernel: _forward.3
$region0: #{_forward.3}
  #allocation0 [shape = 'u32[]', space=smem, size = 0x4, offset = 0x4, fixed_abs, tag = 'smem constant byte address 0x4 - core index']
  #allocation1 [shape = 'u32[144,128]{1,0:T(1,128)}', space=vmem, size = 0x12000, scoped, tag = 'internal scratch']
  #allocation2 [shape = 'f32[18,128]{1,0:T(8,128)}', space=vmem, size = 0x3000, scoped, tag = 'scratch operand']
  %s0 = inlined_call_operand.vmem [shape: f32[2,16,256], index: 0, kind: input, shape index: {}]
  %s1 = inlined_call_operand.vmem [shape: f32[1,128], index: 1, kind: input, shape index: {}]
  %s2 = inlined_call_operand.vmem [shape: f32[1,128], index: 2, kind: input, shape index: {}]
  %s3 = inlined_call_operand.vmem [shape: f32[384,128], index: 3, kind: input, shape index: {}]
  %s4 = inlined_call_operand.vmem [shape: f32[1,128], index: 4, kind: input, shape index: {}]
  %s5 = inlined_call_operand.vmem [shape: f32[2,16,128], index: 5, kind: output, shape index: {}]
  %s6 = sld [smem:[#allocation0]]
  $region53: #{_forward.3} parent=0
    _
  %s8 = ssub.s32 1, %s6
  %s9 = scalar_select 0, %s8, %s6
  loop: start=0, step=1, limit=4
  $region2: #{_forward.3} parent=0 // loop_pre_header
    _
  $region3: #{_forward.3} parent=0 // loop_header
    %s11 = sphi 0, %s15
    %p12 = scmp.ge.s32.totalorder %s11, 4
    %s21 = sphi 0, %s23
    %s24 = sphi 0, %s21
    %s25 = sphi 0, %s24
    %s41 = sphi 0, %s25
    %s45 = sphi 0, %s45
    %s47 = sphi 0, %s45
    %s48 = sphi 0, %s47
    %s62 = sphi 0, %s48
    %s66 = sphi 0, %s66
    %s68 = sphi 0, %s66
    %s69 = sphi 0, %s68
    %s83 = sphi 0, %s69
    %s87 = sphi 0, %s87
    %s89 = sphi 0, %s87
    %s90 = sphi 0, %s89
    %s104 = sphi 0, %s90
    %s108 = sphi 0, %s108
    %s110 = sphi 0, %s108
    %s111 = sphi 0, %s110
    %s125 = sphi 0, %s111
    %s131 = sphi 0, %s133
    %s134 = sphi 0, %s131
    %s135 = sphi 0, %s134
    %s151 = sphi 0, %s135
  $region4: #{_forward.3} parent=0 // loop_header_branch
    %14 = sbr.rel (%p12) target = $region8
  $region5: #{_forward.3} parent=0 // loop_body
    %s16 = ssub.s32 %s11, 1
    %s17 = ssub.s32 %s11, 2
    %s18 = sadd.s32 %s11, 1
    %s19 = ssub.s32 %s11, %s18
    %p20 = scmp.eq.s32.totalorder %s19, 0
    %s22 = sadd.s32 %s21, 1
    %s23 = scalar_select %p20, %s21, %s22
    %p26 = pneg %p20
    %p27 = scmp.eq.s32.totalorder %s11, 1
    %p28 = por %p26, %p27
    %p29 = scmp.ne.s32.totalorder %s21, %s24
    %p30 = scmp.eq.s32.totalorder %s11, 0
    %p31 = por %p29, %p30
    %p32 = scmp.ne.s32.totalorder %s21, %s24
    %p33 = scmp.eq.s32.totalorder %s16, 1
    %p34 = por %p32, %p33
    %p35 = scmp.ne.s32.totalorder %s24, %s25
    %p36 = scmp.eq.s32.totalorder %s16, 0
    %p37 = por %p35, %p36
    %p38 = scmp.ne.s32.totalorder %s24, %s25
    %p39 = scmp.eq.s32.totalorder %s17, 1
    %p40 = por %p38, %p39
    %p42 = scmp.ne.s32.totalorder %s25, %s41
    %p43 = scmp.eq.s32.totalorder %s17, 0
    %p44 = por %p42, %p43
    %s46 = sadd.s32 %s45, 1
    %p49 = scmp.eq.s32.totalorder %s11, 1
    %p50 = scmp.ne.s32.totalorder %s45, %s47
    %p51 = scmp.eq.s32.totalorder %s11, 0
    %p52 = por %p50, %p51
    %p53 = scmp.ne.s32.totalorder %s45, %s47
    %p54 = scmp.eq.s32.totalorder %s16, 1
    %p55 = por %p53, %p54
    %p56 = scmp.ne.s32.totalorder %s47, %s48
    %p57 = scmp.eq.s32.totalorder %s16, 0
    %p58 = por %p56, %p57
    %p59 = scmp.ne.s32.totalorder %s47, %s48
    %p60 = scmp.eq.s32.totalorder %s17, 1
    %p61 = por %p59, %p60
    %p63 = scmp.ne.s32.totalorder %s48, %s62
    %p64 = scmp.eq.s32.totalorder %s17, 0
    %p65 = por %p63, %p64
    %s67 = sadd.s32 %s66, 1
    %p70 = scmp.eq.s32.totalorder %s11, 1
    %p71 = scmp.ne.s32.totalorder %s66, %s68
    %p72 = scmp.eq.s32.totalorder %s11, 0
    %p73 = por %p71, %p72
    %p74 = scmp.ne.s32.totalorder %s66, %s68
    %p75 = scmp.eq.s32.totalorder %s16, 1
    %p76 = por %p74, %p75
    %p77 = scmp.ne.s32.totalorder %s68, %s69
    %p78 = scmp.eq.s32.totalorder %s16, 0
    %p79 = por %p77, %p78
    %p80 = scmp.ne.s32.totalorder %s68, %s69
    %p81 = scmp.eq.s32.totalorder %s17, 1
    %p82 = por %p80, %p81
    %p84 = scmp.ne.s32.totalorder %s69, %s83
    %p85 = scmp.eq.s32.totalorder %s17, 0
    %p86 = por %p84, %p85
    %s88 = sadd.s32 %s87, 1
    %p91 = scmp.eq.s32.totalorder %s11, 1
    %p92 = scmp.ne.s32.totalorder %s87, %s89
    %p93 = scmp.eq.s32.totalorder %s11, 0
    %p94 = por %p92, %p93
    %p95 = scmp.ne.s32.totalorder %s87, %s89
    %p96 = scmp.eq.s32.totalorder %s16, 1
    %p97 = por %p95, %p96
    %p98 = scmp.ne.s32.totalorder %s89, %s90
    %p99 = scmp.eq.s32.totalorder %s16, 0
    %p100 = por %p98, %p99
    %p101 = scmp.ne.s32.totalorder %s89, %s90
    %p102 = scmp.eq.s32.totalorder %s17, 1
    %p103 = por %p101, %p102
    %p105 = scmp.ne.s32.totalorder %s90, %s104
    %p106 = scmp.eq.s32.totalorder %s17, 0
    %p107 = por %p105, %p106
    %s109 = sadd.s32 %s108, 1
    %p112 = scmp.eq.s32.totalorder %s11, 1
    %p113 = scmp.ne.s32.totalorder %s108, %s110
    %p114 = scmp.eq.s32.totalorder %s11, 0
    %p115 = por %p113, %p114
    %p116 = scmp.ne.s32.totalorder %s108, %s110
    %p117 = scmp.eq.s32.totalorder %s16, 1
    %p118 = por %p116, %p117
    %p119 = scmp.ne.s32.totalorder %s110, %s111
    %p120 = scmp.eq.s32.totalorder %s16, 0
    %p121 = por %p119, %p120
    %p122 = scmp.ne.s32.totalorder %s110, %s111
    %p123 = scmp.eq.s32.totalorder %s17, 1
    %p124 = por %p122, %p123
    %p126 = scmp.ne.s32.totalorder %s111, %s125
    %p127 = scmp.eq.s32.totalorder %s17, 0
    %p128 = por %p126, %p127
    %s129 = ssub.s32 %s11, %s18
    %p130 = scmp.eq.s32.totalorder %s129, 0
    %s132 = sadd.s32 %s131, 1
    %s133 = scalar_select %p130, %s131, %s132
    %p136 = pneg %p130
    %p137 = scmp.eq.s32.totalorder %s11, 1
    %p138 = por %p136, %p137
    %p139 = scmp.ne.s32.totalorder %s131, %s134
    %p140 = scmp.eq.s32.totalorder %s11, 0
    %p141 = por %p139, %p140
    %p142 = scmp.ne.s32.totalorder %s131, %s134
    %p143 = scmp.eq.s32.totalorder %s16, 1
    %p144 = por %p142, %p143
    %p145 = scmp.ne.s32.totalorder %s134, %s135
    %p146 = scmp.eq.s32.totalorder %s16, 0
    %p147 = por %p145, %p146
    %p148 = scmp.ne.s32.totalorder %s134, %s135
    %p149 = scmp.eq.s32.totalorder %s17, 1
    %p150 = por %p148, %p149
    %p152 = scmp.ne.s32.totalorder %s135, %s151
    %p153 = scmp.eq.s32.totalorder %s17, 0
    %p154 = por %p152, %p153
    %p155 = scmp.le.s32.totalorder 1, %s11
    %p156 = scmp.lt.s32.totalorder %s11, 3
    %p157 = pnand %p155, %p156
    %p158 = pneg %p157
    // Predicated region
    $region9: #{_forward.3} parent=5 // pred_check
      _
    $region10: #{_forward.3} parent=5 // pred_check_branch
      %160 = sbr.rel (%p157) target = $region12
    $region11: #{_forward.3} parent=5 // pred_region
      %s161 = ssub.s32 %s11, 1
      // Predicated region
      $region13: #{_forward.3} parent=11 // pred_check
        %p162 = pneg %p58
      $region14: #{_forward.3} parent=11 // pred_check_branch
        %164 = sbr.rel (%p162) target = $region16
      $region15: #{_forward.3} parent=11 // pred_region
        _
      $region16: #{_forward.3} parent=11 // pred_fallthru
        _
      // Predicated region
      $region17: #{_forward.3} parent=11 // pred_check
        %p165 = pneg %p79
      $region18: #{_forward.3} parent=11 // pred_check_branch
        %167 = sbr.rel (%p165) target = $region20
      $region19: #{_forward.3} parent=11 // pred_region
        _
      $region20: #{_forward.3} parent=11 // pred_fallthru
        _
      // Predicated region
      $region21: #{_forward.3} parent=11 // pred_check
        %p168 = pneg %p100
      $region22: #{_forward.3} parent=11 // pred_check_branch
        %170 = sbr.rel (%p168) target = $region24
      $region23: #{_forward.3} parent=11 // pred_region
        _
      $region24: #{_forward.3} parent=11 // pred_fallthru
        _
      // Predicated region
      $region25: #{_forward.3} parent=11 // pred_check
        %p171 = pneg %p121
      $region26: #{_forward.3} parent=11 // pred_check_branch
        %173 = sbr.rel (%p171) target = $region28
      $region27: #{_forward.3} parent=11 // pred_region
        _
      $region28: #{_forward.3} parent=11 // pred_fallthru
        _
    $region12: #{_forward.3} parent=5 // pred_fallthru
      _
    %p174 = scmp.lt.s32.totalorder %s11, 2
    // Predicated region
    $region29: #{_forward.3} parent=5 // pred_check
      %p175 = pneg %p174
    $region30: #{_forward.3} parent=5 // pred_check_branch
      %177 = sbr.rel (%p175) target = $region32
    $region31: #{_forward.3} parent=5 // pred_region
      // Predicated region
      $region33: #{_forward.3} parent=31 // pred_check
        %p178 = pneg %p31
      $region34: #{_forward.3} parent=31 // pred_check_branch
        %180 = sbr.rel (%p178) target = $region36
      $region35: #{_forward.3} parent=31 // pred_region
        %p181 = scmp.lt.s32.totalorder %s11, 1
        %s182 = scalar_select %p181, %s11, 1
        %s183 = smul.addr %s182, 4
        %s184 = smul.addr %s183, 8
        %s185 = scalar_lea.vmem %s0, %s184
      $region36: #{_forward.3} parent=31 // pred_fallthru
        _
    $region32: #{_forward.3} parent=5 // pred_fallthru
      _
    %p186 = scmp.le.s32.totalorder 1, %s11
    %p187 = scmp.lt.s32.totalorder %s11, 3
    %p188 = pnand %p186, %p187
    %p189 = pneg %p188
    // Predicated region
    $region37: #{_forward.3} parent=5 // pred_check
      _
    $region38: #{_forward.3} parent=5 // pred_check_branch
      %191 = sbr.rel (%p188) target = $region40
    $region39: #{_forward.3} parent=5 // pred_region
      %s192 = ssub.s32 %s11, 1
      %p193 = scmp.lt.s32.totalorder %s16, 1
      %s194 = scalar_select %p193, %s16, 1
      %s195 = smul.addr %s194, 4
      %s196 = smul.addr %s195, 8
      %s197 = scalar_lea.vmem %s0, %s196
      %p198 = pneg %p37
      %p199 = pneg %p34
      %p200 = pneg %p58
      %p201 = pneg %p55
      %p202 = pneg %p79
      %p203 = pneg %p76
      %p204 = pneg %p100
      %p205 = pneg %p97
      %p206 = pneg %p121
      %p207 = pneg %p118
      %p208 = pneg %p147
      %p209 = pneg %p144
      %p210 = scmp.lt.s32.totalorder %s16, 1
      %s211 = scalar_select %p210, %s16, 1
      %s212 = smul.addr %s211, 2
      %s213 = smul.addr %s212, 8
      %s214 = scalar_lea.vmem %s5, %s213
      %p215 = scmp.lt.s32.totalorder %s16, 1
      %s216 = scalar_select %p215, %s16, 1
      %s217 = smul.addr %s216, 4
      %s218 = smul.addr %s217, 8
      %s219 = scalar_lea.vmem %s0, %s218
      %p220 = scmp.lt.s32.totalorder %s16, 1
      %s221 = scalar_select %p220, %s16, 1
      %s222 = smul.addr %s221, 2
      %s223 = smul.addr %s222, 8
      %s224 = scalar_lea.vmem %s5, %s223
      %v225 = vld [vmem:[%s219] sm:$0xff]
      %v226 = vld [vmem:[%s219 + $0x8] sm:$0xff]
      %v227 = vld [vmem:[%s219 + $0x10] sm:$0xff]
      %v228 = vld [vmem:[%s219 + $0x18] sm:$0xff]
      %v229 = vld [vmem:[%s1] sm:$0x1]
      %v231 = vlaneseq
      %v232 = vshrl.u32 %v231, 7
      %v233 = vsub.s32 0, %v232
      %v234 = vrot.slane %v229, %v233
      %v236 = vmul.f32 %v225, %v234
      %v237 = vmul.f32 %v227, %v234
      %v238 = vld [vmem:[%s2] sm:$0x1]
      %v240 = vlaneseq
      %v241 = vshrl.u32 %v240, 7
      %v242 = vsub.s32 0, %v241
      %v243 = vrot.slane %v238, %v242
      %v245 = vadd.f32 %v236, %v243
      %v246 = vadd.f32 %v237, %v243
      %v247 = vmax.f32 %v245, 0.0
      %v248 = vmax.f32 %v246, 0.0
      %249 = vst [vmem:[#allocation2] sm:$0x1] 0.0
      %250 = vst [vmem:[#allocation2 + $0x11] sm:$0x1] 0.0
      %251 = vst [vmem:[#allocation2 + $0x1] sm:$0xff] %v247
      %252 = vst [vmem:[#allocation2 + $0x9] sm:$0xff] %v248
      %v253 = vld [vmem:[#allocation2] sm:$0xff]
      %v254 = vld [vmem:[#allocation2 + $0x8] sm:$0xff]
      %v255 = vld [vmem:[#allocation2 + $0x1] sm:$0xff]
      %v256 = vld [vmem:[#allocation2 + $0x9] sm:$0xff]
      %v257 = vld [vmem:[#allocation2 + $0x2] sm:$0xff]
      %v258 = vld [vmem:[#allocation2 + $0xa] sm:$0xff]
      %v259 = vld [vmem:[%s3] sm:$0xff]
      %v260 = vld [vmem:[%s3 + $0x8] sm:$0xff]
      %v261 = vld [vmem:[%s3 + $0x10] sm:$0xff]
      %v262 = vld [vmem:[%s3 + $0x18] sm:$0xff]
      %v263 = vld [vmem:[%s3 + $0x20] sm:$0xff]
      %v264 = vld [vmem:[%s3 + $0x28] sm:$0xff]
      %v265 = vld [vmem:[%s3 + $0x30] sm:$0xff]
      %v266 = vld [vmem:[%s3 + $0x38] sm:$0xff]
      %v267 = vld [vmem:[%s3 + $0x40] sm:$0xff]
      %v268 = vld [vmem:[%s3 + $0x48] sm:$0xff]
      %v269 = vld [vmem:[%s3 + $0x50] sm:$0xff]
      %v270 = vld [vmem:[%s3 + $0x58] sm:$0xff]
      %v271 = vld [vmem:[%s3 + $0x60] sm:$0xff]
      %v272 = vld [vmem:[%s3 + $0x68] sm:$0xff]
      %v273 = vld [vmem:[%s3 + $0x70] sm:$0xff]
      %v274 = vld [vmem:[%s3 + $0x78] sm:$0xff]
      %v275 = vld [vmem:[%s3 + $0x80] sm:$0xff]
      %v276 = vld [vmem:[%s3 + $0x88] sm:$0xff]
      %v277 = vld [vmem:[%s3 + $0x90] sm:$0xff]
      %v278 = vld [vmem:[%s3 + $0x98] sm:$0xff]
      %v279 = vld [vmem:[%s3 + $0xa0] sm:$0xff]
      %v280 = vld [vmem:[%s3 + $0xa8] sm:$0xff]
      %v281 = vld [vmem:[%s3 + $0xb0] sm:$0xff]
      %v282 = vld [vmem:[%s3 + $0xb8] sm:$0xff]
      %v283 = vld [vmem:[%s3 + $0xc0] sm:$0xff]
      %v284 = vld [vmem:[%s3 + $0xc8] sm:$0xff]
      %v285 = vld [vmem:[%s3 + $0xd0] sm:$0xff]
      %v286 = vld [vmem:[%s3 + $0xd8] sm:$0xff]
      %v287 = vld [vmem:[%s3 + $0xe0] sm:$0xff]
      %v288 = vld [vmem:[%s3 + $0xe8] sm:$0xff]
      %v289 = vld [vmem:[%s3 + $0xf0] sm:$0xff]
      %v290 = vld [vmem:[%s3 + $0xf8] sm:$0xff]
      %v291 = vld [vmem:[%s3 + $0x100] sm:$0xff]
      %v292 = vld [vmem:[%s3 + $0x108] sm:$0xff]
      %v293 = vld [vmem:[%s3 + $0x110] sm:$0xff]
      %v294 = vld [vmem:[%s3 + $0x118] sm:$0xff]
      %v295 = vld [vmem:[%s3 + $0x120] sm:$0xff]
      %v296 = vld [vmem:[%s3 + $0x128] sm:$0xff]
      %v297 = vld [vmem:[%s3 + $0x130] sm:$0xff]
      %v298 = vld [vmem:[%s3 + $0x138] sm:$0xff]
      %v299 = vld [vmem:[%s3 + $0x140] sm:$0xff]
      %v300 = vld [vmem:[%s3 + $0x148] sm:$0xff]
      %v301 = vld [vmem:[%s3 + $0x150] sm:$0xff]
      %v302 = vld [vmem:[%s3 + $0x158] sm:$0xff]
      %v303 = vld [vmem:[%s3 + $0x160] sm:$0xff]
      %v304 = vld [vmem:[%s3 + $0x168] sm:$0xff]
      %v305 = vld [vmem:[%s3 + $0x170] sm:$0xff]
      %v306 = vld [vmem:[%s3 + $0x178] sm:$0xff]
      %v307 = vld [vmem:[%s4] sm:$0x1]
      %v309 = vlaneseq
      %v310 = vshrl.u32 %v309, 7
      %v311 = vsub.s32 0, %v310
      %v312 = vrot.slane %v307, %v311
      %314 = vmatprep.subr.mxu0 0.0
      %315 = vmatpush1.msra.mxu0 %v259
      %316 = vmatprep.subr.mxu0 0.0
      %317 = vmatpush1.msra.mxu0 %v260
      %318 = vmatprep.subr.mxu0 0.0
      %319 = vmatpush1.msra.mxu0 %v261
      %320 = vmatprep.subr.mxu0 0.0
      %321 = vmatpush1.msra.mxu0 %v262
      %322 = vmatprep.subr.mxu0 0.0
      %323 = vmatpush1.msra.mxu0 %v263
      %324 = vmatprep.subr.mxu0 0.0
      %325 = vmatpush1.msra.mxu0 %v264
      %326 = vmatprep.subr.mxu0 0.0
      %327 = vmatpush1.msra.mxu0 %v265
      %328 = vmatprep.subr.mxu0 0.0
      %329 = vmatpush1.msra.mxu0 %v266
      %330 = vmatprep.subr.mxu0 0.0
      %331 = vmatpush1.msra.mxu0 %v267
      %332 = vmatprep.subr.mxu0 0.0
      %333 = vmatpush1.msra.mxu0 %v268
      %334 = vmatprep.subr.mxu0 0.0
      %335 = vmatpush1.msra.mxu0 %v269
      %336 = vmatprep.subr.mxu0 0.0
      %337 = vmatpush1.msra.mxu0 %v270
      %338 = vmatprep.subr.mxu0 0.0
      %339 = vmatpush1.msra.mxu0 %v271
      %340 = vmatprep.subr.mxu0 0.0
      %341 = vmatpush1.msra.mxu0 %v272
      %342 = vmatprep.subr.mxu0 0.0
      %343 = vmatpush1.msra.mxu0 %v273
      %344 = vmatprep.subr.mxu0 0.0
      %345 = vmatpush1.msra.mxu0 %v274
      %346 = vmatprep.subr.mxu0 0.0
      %347 = vmatpush1.msra.mxu0 %v275
      %348 = vmatprep.subr.mxu0 0.0
      %349 = vmatpush1.msra.mxu0 %v276
      %350 = vmatprep.subr.mxu0 0.0
      %351 = vmatpush1.msra.mxu0 %v277
      %352 = vmatprep.subr.mxu0 0.0
      %353 = vmatpush1.msra.mxu0 %v278
      %354 = vmatprep.subr.mxu0 0.0
      %355 = vmatpush1.msra.mxu0 %v279
      %356 = vmatprep.subr.mxu0 0.0
      %357 = vmatpush1.msra.mxu0 %v280
      %358 = vmatprep.subr.mxu0 0.0
      %359 = vmatpush1.msra.mxu0 %v281
      %360 = vmatprep.subr.mxu0 0.0
      %361 = vmatpush1.msra.mxu0 %v282
      %362 = vmatprep.subr.mxu0 0.0
      %363 = vmatpush1.msra.mxu0 %v283
      %364 = vmatprep.subr.mxu0 0.0
      %365 = vmatpush1.msra.mxu0 %v284
      %366 = vmatprep.subr.mxu0 0.0
      %367 = vmatpush1.msra.mxu0 %v285
      %368 = vmatprep.subr.mxu0 0.0
      %369 = vmatpush1.msra.mxu0 %v286
      %370 = vmatprep.subr.mxu0 0.0
      %371 = vmatpush1.msra.mxu0 %v287
      %372 = vmatprep.subr.mxu0 0.0
      %373 = vmatpush1.msra.mxu0 %v288
      %374 = vmatprep.subr.mxu0 0.0
      %375 = vmatpush1.msra.mxu0 %v289
      %376 = vmatprep.subr.mxu0 0.0
      %377 = vmatpush1.msra.mxu0 %v290
      %378 = vmatprep.mubr.f32.mxu0 %v255
      %379 = vmatmul.mubr.f32.gmra.mrb[0].mxu0 %v253
      %v380 = vpop.f32.mrb[0].mxu0
      %v381 = vadd.f32 %v312, %v380
      %v382 = vpop.f32.mrb[0].mxu0
      %383 = vmatprep.mubr.f32.mxu0 %v256
      %384 = vmatmul.mubr.f32.gmra.mrb[0].mxu0 %v254
      %v385 = vpop.f32.mrb[0].mxu0
      %v386 = vadd.f32 %v312, %v385
      %v387 = vpop.f32.mrb[0].mxu0
      %388 = vdwg.mxu0
      %389 = vmatprep.subr.mxu0 0.0
      %390 = vmatpush1.msra.mxu0 %v291
      %391 = vmatprep.subr.mxu0 0.0
      %392 = vmatpush1.msra.mxu0 %v292
      %393 = vmatprep.subr.mxu0 0.0
      %394 = vmatpush1.msra.mxu0 %v293
      %395 = vmatprep.subr.mxu0 0.0
      %396 = vmatpush1.msra.mxu0 %v294
      %397 = vmatprep.subr.mxu0 0.0
      %398 = vmatpush1.msra.mxu0 %v295
      %399 = vmatprep.subr.mxu0 0.0
      %400 = vmatpush1.msra.mxu0 %v296
      %401 = vmatprep.subr.mxu0 0.0
      %402 = vmatpush1.msra.mxu0 %v297
      %403 = vmatprep.subr.mxu0 0.0
      %404 = vmatpush1.msra.mxu0 %v298
      %405 = vmatprep.subr.mxu0 0.0
      %406 = vmatpush1.msra.mxu0 %v299
      %407 = vmatprep.subr.mxu0 0.0
      %408 = vmatpush1.msra.mxu0 %v300
      %409 = vmatprep.subr.mxu0 0.0
      %410 = vmatpush1.msra.mxu0 %v301
      %411 = vmatprep.subr.mxu0 0.0
      %412 = vmatpush1.msra.mxu0 %v302
      %413 = vmatprep.subr.mxu0 0.0
      %414 = vmatpush1.msra.mxu0 %v303
      %415 = vmatprep.subr.mxu0 0.0
      %416 = vmatpush1.msra.mxu0 %v304
      %417 = vmatprep.subr.mxu0 0.0
      %418 = vmatpush1.msra.mxu0 %v305
      %419 = vmatprep.subr.mxu0 0.0
      %420 = vmatpush1.msra.mxu0 %v306
      %421 = vmatprep.subr.mxu0 0.0
      %422 = vmatpush1.msra.mxu0 0.0
      %423 = vmatprep.subr.mxu0 0.0
      %424 = vmatpush1.msra.mxu0 0.0
      %425 = vmatprep.subr.mxu0 0.0
      %426 = vmatpush1.msra.mxu0 0.0
      %427 = vmatprep.subr.mxu0 0.0
      %428 = vmatpush1.msra.mxu0 0.0
      %429 = vmatprep.subr.mxu0 0.0
      %430 = vmatpush1.msra.mxu0 0.0
      %431 = vmatprep.subr.mxu0 0.0
      %432 = vmatpush1.msra.mxu0 0.0
      %433 = vmatprep.subr.mxu0 0.0
      %434 = vmatpush1.msra.mxu0 0.0
      %435 = vmatprep.subr.mxu0 0.0
      %436 = vmatpush1.msra.mxu0 0.0
      %437 = vmatprep.subr.mxu0 0.0
      %438 = vmatpush1.msra.mxu0 0.0
      %439 = vmatprep.subr.mxu0 0.0
      %440 = vmatpush1.msra.mxu0 0.0
      %441 = vmatprep.subr.mxu0 0.0
      %442 = vmatpush1.msra.mxu0 0.0
      %443 = vmatprep.subr.mxu0 0.0
      %444 = vmatpush1.msra.mxu0 0.0
      %445 = vmatprep.subr.mxu0 0.0
      %446 = vmatpush1.msra.mxu0 0.0
      %447 = vmatprep.subr.mxu0 0.0
      %448 = vmatpush1.msra.mxu0 0.0
      %449 = vmatprep.subr.mxu0 0.0
      %450 = vmatpush1.msra.mxu0 0.0
      %451 = vmatprep.subr.mxu0 0.0
      %452 = vmatpush1.msra.mxu0 0.0
      %453 = vmatprep.mubr.f32.mxu0 0.0
      %454 = vmatmul.mubr.f32.gmra.mrb[0].mxu0 %v257
      %v455 = vpop.f32.mrb[0].mxu0
      %v456 = vadd.f32 %v381, %v455
      %v457 = vpop.f32.mrb[0].mxu0
      %458 = vmatprep.mubr.f32.mxu0 0.0
      %459 = vmatmul.mubr.f32.gmra.mrb[0].mxu0 %v258
      %v460 = vpop.f32.mrb[0].mxu0
      %v461 = vadd.f32 %v386, %v460
      %v462 = vpop.f32.mrb[0].mxu0
      %463 = vdwg.mxu0
      %v464 = vadd.f32 %v226, %v456
      %v465 = vadd.f32 %v228, %v461
      %466 = vst [vmem:[%s224] sm:$0xff] %v464
      %467 = vst [vmem:[%s224 + $0x8] sm:$0xff] %v465
      %p468 = scmp.lt.s32.totalorder %s16, 1
      %s469 = scalar_select %p468, %s16, 1
      %s470 = smul.addr %s469, 2
      %s471 = smul.addr %s470, 8
      %s472 = scalar_lea.vmem %s5, %s471
      // Predicated region
      $region41: #{_forward.3} parent=39 // pred_check
        %p473 = pneg %p144
      $region42: #{_forward.3} parent=39 // pred_check_branch
        %475 = sbr.rel (%p473) target = $region44
      $region43: #{_forward.3} parent=39 // pred_region
        _
      $region44: #{_forward.3} parent=39 // pred_fallthru
        _
    $region40: #{_forward.3} parent=5 // pred_fallthru
      _
    %p476 = scmp.le.s32.totalorder 2, %s11
    // Predicated region
    $region45: #{_forward.3} parent=5 // pred_check
      %p477 = pneg %p476
    $region46: #{_forward.3} parent=5 // pred_check_branch
      %479 = sbr.rel (%p477) target = $region48
    $region47: #{_forward.3} parent=5 // pred_region
      %s480 = ssub.s32 %s11, 2
      // Predicated region
      $region49: #{_forward.3} parent=47 // pred_check
        %p481 = pneg %p150
      $region50: #{_forward.3} parent=47 // pred_check_branch
        %483 = sbr.rel (%p481) target = $region52
      $region51: #{_forward.3} parent=47 // pred_region
        %p484 = scmp.lt.s32.totalorder %s17, 1
        %s485 = scalar_select %p484, %s17, 1
        %s486 = smul.addr %s485, 2
        %s487 = smul.addr %s486, 8
        %s488 = scalar_lea.vmem %s5, %s487
      $region52: #{_forward.3} parent=47 // pred_fallthru
        _
    $region48: #{_forward.3} parent=5 // pred_fallthru
      _
  $region6: #{_forward.3} parent=0 // loop_footer
    %s15 = sadd.s32 1, %s11
  $region7: #{_forward.3} parent=0 // loop_footer_branch
    %10 = sbr.rel target = $region3
  $region8: #{_forward.3} parent=0 // loop_exit
    _

</llo_original>
